<compile_context>
chip_gen: v6e
topology: v6e:2x2x1
jax: 0.10.0
libtpu: 0.0.40
codegen_flags: <defaults>
</compile_context>

<pallas_src>
import functools

import jax
import jax.numpy as jnp
from jax.experimental import pallas as pl
from jax.experimental.pallas import tpu as pltpu

_LANE = 128
_SUBLANE = 8


def _round_up(x, m):
    return (x + m - 1) // m * m


def _nbytes(a):
    return a.size * a.dtype.itemsize


# ----------------------------------------------------------------------------
# Kernel: grid=(T,) decode steps; weights + recurrent state stay VMEM-resident
# ----------------------------------------------------------------------------
def _decoder_kernel(ids_ref, emb_ref, w_ih_ref, w_hh_ref, b_ref,
                    h0_ref, c0_ref, fc_w_ref, fc_b_ref,
                    pred_ref, h_ref, c_ref):
    """One decode step per grid iteration.

    ids_ref : (1, Bp, 1)    int32  this step's token ids (padded batch)
    emb_ref : (Vp, Dk)      bf16   embedding table (vocab rows padded to 128)
    w_ih_ref: (L, 4, Dk, H) bf16   per-layer, per-gate W_ih^T (i, f, g, o)
    w_hh_ref: (L, 4, Dk, H) bf16   per-layer, per-gate W_hh^T
    b_ref   : (L, 4, 1, H)  f32    per-layer, per-gate b_ih + b_hh
    h0_ref  : (L, Bp, H)    f32    initial hidden state (read only at t == 0)
    c0_ref  : (L, Bp, H)    f32    initial cell state   (read only at t == 0)
    fc_w_ref: (H, Vp)       bf16   fc_out weight^T (vocab cols padded)
    fc_b_ref: (1, Vp)       f32    fc_out bias (padded)
    pred_ref: (1, Bp, Vp)   f32    this step's logits (lane-dense store)
    h_ref   : (L, Bp, H)    f32    carried hidden state (constant block index
                                   -> resident in VMEM across all T steps)
    c_ref   : (L, Bp, H)    f32    carried cell state
    """
    num_layers, _, H = h0_ref.shape
    Bp = ids_ref.shape[1]
    Vp = emb_ref.shape[0]
    Dk = w_ih_ref.shape[2]
    t = pl.program_id(0)

    # Seed the resident state from the initial state on the first step only.
    @pl.when(t == 0)
    def _():
        h_ref[...] = h0_ref[...]
        c_ref[...] = c0_ref[...]

    # Embedding gather as a one-hot matmul (MXU is otherwise idle; V is tiny).
    # TODO(synk): switch to a scalar-prefetched row gather for realistic vocab.
    ids = ids_ref[0]                                              # (Bp, 1)
    lanes = jax.lax.broadcasted_iota(jnp.int32, (Bp, Vp), 1)
    onehot = (lanes == ids).astype(jnp.bfloat16)                  # (Bp, Vp)
    x = jnp.dot(onehot, emb_ref[...],
                preferred_element_type=jnp.float32)               # (Bp, Dk) f32
    # dropout(embedded): identity in eval mode.

    def to_k(v):
        # Pad lane width up to Dk (no-op when emb_dim == hid_dim) + bf16 cast.
        if v.shape[-1] != Dk:
            v = jnp.pad(v, ((0, 0), (0, Dk - v.shape[-1])))
        return v.astype(jnp.bfloat16)

    for layer in range(num_layers):       # tiny static trip count -> unrolled
        h = h_ref[layer]                                          # (Bp, H) f32
        c = c_ref[layer]
        xk = to_k(x)                                              # (Bp, Dk) bf16
        hk = to_k(h)

        def gate(g):
            # Two small MXU dots per gate, f32 accumulation (no concat, no
            # lane-slicing of a packed gate vector -> safe + zero weight pad).
            return (jnp.dot(xk, w_ih_ref[layer, g],
                            preferred_element_type=jnp.float32)
                    + jnp.dot(hk, w_hh_ref[layer, g],
                              preferred_element_type=jnp.float32)
                    + b_ref[layer, g])                            # (Bp, H) f32

        i_g = jax.nn.sigmoid(gate(0))
        f_g = jax.nn.sigmoid(gate(1))
        g_g = jnp.tanh(gate(2))
        o_g = jax.nn.sigmoid(gate(3))

        c_new = f_g * c + i_g * g_g
        h_new = o_g * jnp.tanh(c_new)
        h_ref[layer] = h_new
        c_ref[layer] = c_new
        x = h_new                  # inter-layer dropout: identity in eval mode

    # fc_out on the top layer's hidden state; Vp % 128 == 0 -> lane-dense store.
    pred_ref[0] = (jnp.dot(x.astype(jnp.bfloat16), fc_w_ref[...],
                           preferred_element_type=jnp.float32)
                   + fc_b_ref[...])


# ----------------------------------------------------------------------------
# pallas_call wrapper (padded, already-laid-out operands)
# ----------------------------------------------------------------------------
def _fused_decoder_call(params, ids, h0, c0):
    """ids: (T, Bp, 1) int32; h0/c0: (L, Bp, H) f32 (already batch-padded)."""
    T, Bp, _ = ids.shape
    L, _, H = h0.shape
    emb, w_ih, w_hh, b = params["emb"], params["w_ih"], params["w_hh"], params["b"]
    fc_w, fc_b = params["fc_w"], params["fc_b"]
    Vp, Dk = emb.shape

    flops = T * (2 * Bp * Vp * Dk                 # one-hot embedding dot
                 + L * 4 * 2 * (2 * Bp * Dk * H)  # 8 gate dots per layer
                 + 2 * Bp * H * Vp)               # fc_out
    transcendentals = T * L * 5 * Bp * H          # 3 sigmoid + 2 tanh per layer
    bytes_accessed = (_nbytes(ids) + _nbytes(emb) + _nbytes(w_ih) + _nbytes(w_hh)
                      + _nbytes(b) + _nbytes(fc_w) + _nbytes(fc_b)
                      + 2 * (_nbytes(h0) + _nbytes(c0)) + T * Bp * Vp * 4)

    # VMEM budget from actual buffer sizes (x2 headroom covers vreg-tile
    # padding of narrow arrays and double-buffering of the per-step blocks).
    vmem_limit = max(
        4 << 20,
        2 * (_nbytes(emb) + _nbytes(w_ih) + _nbytes(w_hh) + _nbytes(b)
             + _nbytes(fc_w) + _nbytes(fc_b)
             + 2 * (_nbytes(h0) + _nbytes(c0))
             + 2 * (Bp * 4 + Bp * Vp * 4)))

    const2 = lambda t: (0, 0)
    const3 = lambda t: (0, 0, 0)
    const4 = lambda t: (0, 0, 0, 0)

    return pl.pallas_call(
        _decoder_kernel,
        grid=(T,),
        in_specs=[
            pl.BlockSpec((1, Bp, 1), lambda t: (t, 0, 0)),  # this step's ids
            pl.BlockSpec(emb.shape, const2),                # weights: fetched once,
            pl.BlockSpec(w_ih.shape, const4),               # VMEM-resident across
            pl.BlockSpec(w_hh.shape, const4),               # all T steps
            pl.BlockSpec(b.shape, const4),
            pl.BlockSpec(h0.shape, const3),                 # initial state
            pl.BlockSpec(c0.shape, const3),
            pl.BlockSpec(fc_w.shape, const2),
            pl.BlockSpec(fc_b.shape, const2),
        ],
        out_specs=(
            pl.BlockSpec((1, Bp, Vp), lambda t: (t, 0, 0)),  # per-step logits
            pl.BlockSpec(h0.shape, const3),                  # resident h state
            pl.BlockSpec(c0.shape, const3),                  # resident c state
        ),
        out_shape=(jax.ShapeDtypeStruct((T, Bp, Vp), jnp.float32),
                   jax.ShapeDtypeStruct((L, Bp, H), jnp.float32),
                   jax.ShapeDtypeStruct((L, Bp, H), jnp.float32)),
        input_output_aliases={5: 1, 6: 2},                   # h/c updated in place
        cost_estimate=pl.CostEstimate(flops=flops,
                                      transcendentals=transcendentals,
                                      bytes_accessed=bytes_accessed),
        compiler_params=pltpu.CompilerParams(
            dimension_semantics=("arbitrary",),
            vmem_limit_bytes=int(vmem_limit)),
    )(ids, emb, w_ih, w_hh, b, h0, c0, fc_w, fc_b)


# ----------------------------------------------------------------------------
# Parameter init: unpadded f32 (reference) + packed bf16 (kernel) weights
# ----------------------------------------------------------------------------
def init_decoder_params(key, output_dim, emb_dim, hid_dim, num_layers):
    """Returns (kernel_params, ref_params)."""
    keys = jax.random.split(key, 2 + 4 * num_layers)
    k_it = iter(keys)

    emb = jax.random.normal(next(k_it), (output_dim, emb_dim), jnp.float32) * 0.1

    w_ih_t, w_hh_t, bias = [], [], []
    for layer in range(num_layers):
        in_dim = emb_dim if layer == 0 else hid_dim
        # PyTorch stores W_ih:(4H,in), W_hh:(4H,H); we keep the transposes.
        w_ih_t.append(jax.random.normal(next(k_it), (in_dim, 4 * hid_dim),
                                        jnp.float32) * 0.1)
        w_hh_t.append(jax.random.normal(next(k_it), (hid_dim, 4 * hid_dim),
                                        jnp.float32) * 0.1)
        b_ih = jax.random.normal(next(k_it), (4 * hid_dim,), jnp.float32) * 0.1
        b_hh = jax.random.normal(next(k_it), (4 * hid_dim,), jnp.float32) * 0.1
        bias.append(b_ih + b_hh)

    fc_w_t = jax.random.normal(next(k_it), (hid_dim, output_dim),
                               jnp.float32) * 0.1
    fc_b = jnp.zeros((output_dim,), jnp.float32)

    ref_params = {"embedding": emb, "w_ih_t": w_ih_t, "w_hh_t": w_hh_t,
                  "bias": bias, "fc_w_t": fc_w_t, "fc_b": fc_b}

    # ---- kernel layout: bf16, per-gate packed, zero lane padding blow-up ----
    V, E, H, L = output_dim, emb_dim, hid_dim, num_layers
    Vp = _round_up(V, _LANE)     # vocab padded for the one-hot / logits lanes
    Dk = max(E, H)               # shared contraction width (rows of gate mats)

    emb_k = jnp.zeros((Vp, Dk), jnp.bfloat16).at[:V, :E].set(
        emb.astype(jnp.bfloat16))
    w_ih_k = jnp.zeros((L, 4, Dk, H), jnp.bfloat16)
    w_hh_k = jnp.zeros((L, 4, Dk, H), jnp.bfloat16)
    b_k = jnp.zeros((L, 4, 1, H), jnp.float32)
    for layer in range(L):
        in_dim = E if layer == 0 else H
        for g in range(4):       # PyTorch gate order: i, f, g, o
            w_ih_k = w_ih_k.at[layer, g, :in_dim, :].set(
                w_ih_t[layer][:, g * H:(g + 1) * H].astype(jnp.bfloat16))
            w_hh_k = w_hh_k.at[layer, g, :H, :].set(
                w_hh_t[layer][:, g * H:(g + 1) * H].astype(jnp.bfloat16))
            b_k = b_k.at[layer, g, 0, :].set(bias[layer][g * H:(g + 1) * H])

    fc_w_k = jnp.zeros((H, Vp), jnp.bfloat16).at[:, :V].set(
        fc_w_t.astype(jnp.bfloat16))
    fc_b_k = jnp.zeros((1, Vp), jnp.float32).at[0, :V].set(fc_b)

    kernel_params = {"emb": emb_k, "w_ih": w_ih_k, "w_hh": w_hh_k, "b": b_k,
                     "fc_w": fc_w_k, "fc_b": fc_b_k}
    return kernel_params, ref_params


# ----------------------------------------------------------------------------
# Forward wrappers
# ----------------------------------------------------------------------------
@functools.partial(jax.jit, static_argnames=("output_dim",))
def decoder_forward_seq(params, tokens, hidden, cell, *, output_dim):
    """T teacher-forced decode steps fused into ONE pallas_call.

    tokens: (T, B) int token ids; hidden/cell: (num_layers, B, H) f32.
    Returns (logits (T, B, output_dim), hidden, cell) - identical to applying
    the PyTorch Decoder.forward T times.
    """
    T, B = tokens.shape
    L, _, H = hidden.shape
    Bp = _round_up(B, _SUBLANE)

    ids = jnp.zeros((T, Bp, 1), jnp.int32).at[:, :B, 0].set(
        tokens.astype(jnp.int32))
    if Bp == B:                    # pad ONCE per sequence, never per step
        h0 = hidden.astype(jnp.float32)
        c0 = cell.astype(jnp.float32)
    else:
        h0 = jnp.zeros((L, Bp, H), jnp.float32).at[:, :B, :].set(hidden)
        c0 = jnp.zeros((L, Bp, H), jnp.float32).at[:, :B, :].set(cell)

    pred_p, h_p, c_p = _fused_decoder_call(params, ids, h0, c0)
    # NOTE: padded vocab lanes hold logit 0 - always slice to output_dim before
    # any argmax/softmax.
    return pred_p[:, :B, :output_dim], h_p[:, :B, :], c_p[:, :B, :]


def decoder_forward(params, input_ids, hidden, cell, *, output_dim):
    """PyTorch Decoder.forward equivalent (single decode step)."""
    pred, h, c = decoder_forward_seq(params, input_ids[None, :], hidden, cell,
                                     output_dim=output_dim)
    return pred[0], h, c


# ----------------------------------------------------------------------------
# Pure-JAX reference (unpadded f32 weights) for the sanity check
# ----------------------------------------------------------------------------
def decoder_forward_ref(ref_params, input_ids, hidden, cell):
    x = jnp.take(ref_params["embedding"], input_ids, axis=0)
    H = hidden.shape[-1]
    num_layers = hidden.shape[0]
    new_h, new_c = [], []
    for layer in range(num_layers):
        gates = (x @ ref_params["w_ih_t"][layer]
                 + hidden[layer] @ ref_params["w_hh_t"][layer]
                 + ref_params["bias"][layer][None, :])
        i_g = jax.nn.sigmoid(gates[:, 0 * H:1 * H])
        f_g = jax.nn.sigmoid(gates[:, 1 * H:2 * H])
        g_g = jnp.tanh(gates[:, 2 * H:3 * H])
        o_g = jax.nn.sigmoid(gates[:, 3 * H:4 * H])
        c_l = f_g * cell[layer] + i_g * g_g
        h_l = o_g * jnp.tanh(c_l)
        new_h.append(h_l)
        new_c.append(c_l)
        x = h_l
    pred = x @ ref_params["fc_w_t"] + ref_params["fc_b"][None, :]
    return pred, jnp.stack(new_h, 0), jnp.stack(new_c, 0)


def decoder_forward_seq_ref(ref_params, tokens, hidden, cell):
    preds = []
    for t in range(tokens.shape[0]):
        p, hidden, cell = decoder_forward_ref(ref_params, tokens[t], hidden, cell)
        preds.append(p)
    return jnp.stack(preds, 0), hidden, cell


# ----------------------------------------------------------------------------
if __name__ == "__main__":
    OUTPUT_DIM = 64    # vocab size
    EMB_DIM = 32
    HID_DIM = 32
    NUM_LAYERS = 2
    BATCH = 8
    SEQ_LEN = 6        # decode steps fused into one kernel launch

    key = jax.random.PRNGKey(0)
    k_params, k_ids, k_h, k_c = jax.random.split(key, 4)

    kernel_params, ref_params = init_decoder_params(
        k_params, OUTPUT_DIM, EMB_DIM, HID_DIM, NUM_LAYERS)
    tokens = jax.random.randint(k_ids, (SEQ_LEN, BATCH), 0, OUTPUT_DIM,
                                dtype=jnp.int32)
    hidden = jax.random.normal(k_h, (NUM_LAYERS, BATCH, HID_DIM), jnp.float32)
    cell = jax.random.normal(k_c, (NUM_LAYERS, BATCH, HID_DIM), jnp.float32)

    # (1) single decode step - PyTorch forward parity.
    pred1, h1, c1 = decoder_forward(kernel_params, tokens[0], hidden, cell,
                                    output_dim=OUTPUT_DIM)
    # (2) SEQ_LEN decode steps fused into one pallas_call (weights + state
    #     stay VMEM-resident across steps).
    pred_seq, h_T, c_T = decoder_forward_seq(kernel_params, tokens, hidden, cell,
                                             output_dim=OUTPUT_DIM)
    jax.block_until_ready((pred1, h1, c1, pred_seq, h_T, c_T))

    # pure-JAX references (f32 weights; kernel uses bf16 weights)
    pred1_r, h1_r, c1_r = decoder_forward_ref(ref_params, tokens[0], hidden, cell)
    pred_seq_r, h_T_r, c_T_r = decoder_forward_seq_ref(ref_params, tokens,
                                                       hidden, cell)

    assert pred1.shape == (BATCH, OUTPUT_DIM)
    assert h1.shape == (NUM_LAYERS, BATCH, HID_DIM) and c1.shape == h1.shape
    assert pred_seq.shape == (SEQ_LEN, BATCH, OUTPUT_DIM)
    assert h_T.shape == (NUM_LAYERS, BATCH, HID_DIM) and c_T.shape == h_T.shape

    tol = dict(atol=5e-2, rtol=5e-2)   # bf16 weights vs f32 reference
    assert jnp.allclose(pred1, pred1_r, **tol)
    assert jnp.allclose(h1, h1_r, **tol)
    assert jnp.allclose(c1, c1_r, **tol)
    assert jnp.allclose(pred_seq, pred_seq_r, **tol)
    assert jnp.allclose(h_T, h_T_r, **tol)
    assert jnp.allclose(c_T, c_T_r, **tol)

    print("KERNEL_OK")
</pallas_src>

<mosaic_0001>
module attributes {stable_mosaic.version = 11 : i64} {
  func.func @_decoder_kernel(%arg0: i32, %arg1: memref<1x8x1xi32, #tpu.memory_space<vmem>>, %arg2: memref<128x32xbf16, #tpu.memory_space<vmem>>, %arg3: memref<2x4x32x32xbf16, #tpu.memory_space<vmem>>, %arg4: memref<2x4x32x32xbf16, #tpu.memory_space<vmem>>, %arg5: memref<2x4x1x32xf32, #tpu.memory_space<vmem>>, %arg6: memref<2x8x32xf32, #tpu.memory_space<vmem>>, %arg7: memref<2x8x32xf32, #tpu.memory_space<vmem>>, %arg8: memref<32x128xbf16, #tpu.memory_space<vmem>>, %arg9: memref<1x128xf32, #tpu.memory_space<vmem>>, %arg10: memref<1x8x128xf32, #tpu.memory_space<vmem>>, %arg11: memref<2x8x32xf32, #tpu.memory_space<vmem>>, %arg12: memref<2x8x32xf32, #tpu.memory_space<vmem>>) attributes {dimension_semantics = [#tpu.dimension_semantics<arbitrary>], iteration_bounds = array<i64: 1>, scalar_prefetch = 0 : i64, scratch_operands = 0 : i64, tpu.core_type = #tpu.core_type<tc>, window_params = [{transform_indices = @transform_0, window_bounds = array<i64: 1, 8, 1>}, {pipeline_mode = #tpu.pipeline_mode<synchronous>, transform_indices = @transform_1, window_bounds = array<i64: 128, 32>}, {pipeline_mode = #tpu.pipeline_mode<synchronous>, transform_indices = @transform_2, window_bounds = array<i64: 2, 4, 32, 32>}, {pipeline_mode = #tpu.pipeline_mode<synchronous>, transform_indices = @transform_3, window_bounds = array<i64: 2, 4, 32, 32>}, {pipeline_mode = #tpu.pipeline_mode<synchronous>, transform_indices = @transform_4, window_bounds = array<i64: 2, 4, 1, 32>}, {pipeline_mode = #tpu.pipeline_mode<synchronous>, transform_indices = @transform_5, window_bounds = array<i64: 2, 8, 32>}, {pipeline_mode = #tpu.pipeline_mode<synchronous>, transform_indices = @transform_6, window_bounds = array<i64: 2, 8, 32>}, {pipeline_mode = #tpu.pipeline_mode<synchronous>, transform_indices = @transform_7, window_bounds = array<i64: 32, 128>}, {pipeline_mode = #tpu.pipeline_mode<synchronous>, transform_indices = @transform_8, window_bounds = array<i64: 1, 128>}, {transform_indices = @transform_9, window_bounds = array<i64: 1, 8, 128>}, {pipeline_mode = #tpu.pipeline_mode<synchronous>, transform_indices = @transform_10, window_bounds = array<i64: 2, 8, 32>}, {pipeline_mode = #tpu.pipeline_mode<synchronous>, transform_indices = @transform_11, window_bounds = array<i64: 2, 8, 32>}]} {
    %c0_i32 = arith.constant 0 : i32
    %0 = arith.cmpi eq, %arg0, %c0_i32 : i32
    %1 = arith.extui %0 : i1 to i32
    %c0_i32_0 = arith.constant 0 : i32
    %2 = arith.cmpi ne, %1, %c0_i32_0 : i32
    scf.if %2 {
      %c0_152 = arith.constant 0 : index
      %c0_153 = arith.constant 0 : index
      %c0_154 = arith.constant 0 : index
      %176 = vector.load %arg6[%c0_152, %c0_153, %c0_154] : memref<2x8x32xf32, #tpu.memory_space<vmem>>, vector<2x8x32xf32>
      %c0_155 = arith.constant 0 : index
      %c0_156 = arith.constant 0 : index
      %c0_157 = arith.constant 0 : index
      %177 = vector.load %arg11[%c0_155, %c0_156, %c0_157] : memref<2x8x32xf32, #tpu.memory_space<vmem>>, vector<2x8x32xf32>
      tpu.vector_store %arg11[%c0_155, %c0_156, %c0_157], %176 {strides = array<i32>} : memref<2x8x32xf32, #tpu.memory_space<vmem>>, vector<2x8x32xf32>,
      %c0_158 = arith.constant 0 : index
      %c0_159 = arith.constant 0 : index
      %c0_160 = arith.constant 0 : index
      %178 = vector.load %arg7[%c0_158, %c0_159, %c0_160] : memref<2x8x32xf32, #tpu.memory_space<vmem>>, vector<2x8x32xf32>
      %c0_161 = arith.constant 0 : index
      %c0_162 = arith.constant 0 : index
      %c0_163 = arith.constant 0 : index
      %179 = vector.load %arg12[%c0_161, %c0_162, %c0_163] : memref<2x8x32xf32, #tpu.memory_space<vmem>>, vector<2x8x32xf32>
      tpu.vector_store %arg12[%c0_161, %c0_162, %c0_163], %178 {strides = array<i32>} : memref<2x8x32xf32, #tpu.memory_space<vmem>>, vector<2x8x32xf32>,
    } else {
    }
    %c0 = arith.constant 0 : index
    %c0_1 = arith.constant 0 : index
    %c0_2 = arith.constant 0 : index
    %3 = vector.load %arg1[%c0, %c0_1, %c0_2] : memref<1x8x1xi32, #tpu.memory_space<vmem>>, vector<1x8x1xi32>
    %4 = vector.shape_cast %3 : vector<1x8x1xi32> to vector<8x1xi32>
    %5 = tpu.iota {dimensions = array<i32: 1>} : vector<8x128xi32>
    %6 = vector.broadcast %4 : vector<8x1xi32> to vector<8x128xi32>
    %7 = arith.cmpi eq, %5, %6 : vector<8x128xi32>
    %8 = arith.extui %7 : vector<8x128xi1> to vector<8x128xi32>
    %9 = arith.sitofp %8 : vector<8x128xi32> to vector<8x128xf32>
    %10 = arith.truncf %9 : vector<8x128xf32> to vector<8x128xbf16>
    %c0_3 = arith.constant 0 : index
    %c0_4 = arith.constant 0 : index
    %11 = vector.load %arg2[%c0_3, %c0_4] : memref<128x32xbf16, #tpu.memory_space<vmem>>, vector<128x32xbf16>
    %cst = arith.constant dense<0.000000e+00> : vector<8x32xf32>
    %12 = tpu.matmul %10, %11, %cst {dimension_numbers = #tpu.dot_dimension_numbers<[1], [0], [0], [1], [0, 0, 1, 1], [], []>} : vector<8x128xbf16>, vector<128x32xbf16>, vector<8x32xf32> -> vector<8x32xf32>
    %c0_5 = arith.constant 0 : index
    %c0_6 = arith.constant 0 : index
    %c0_7 = arith.constant 0 : index
    %13 = vector.load %arg11[%c0_5, %c0_6, %c0_7] : memref<2x8x32xf32, #tpu.memory_space<vmem>>, vector<1x8x32xf32>
    %14 = vector.shape_cast %13 : vector<1x8x32xf32> to vector<8x32xf32>
    %c0_8 = arith.constant 0 : index
    %c0_9 = arith.constant 0 : index
    %c0_10 = arith.constant 0 : index
    %15 = vector.load %arg12[%c0_8, %c0_9, %c0_10] : memref<2x8x32xf32, #tpu.memory_space<vmem>>, vector<1x8x32xf32>
    %16 = vector.shape_cast %15 : vector<1x8x32xf32> to vector<8x32xf32>
    %17 = arith.truncf %12 : vector<8x32xf32> to vector<8x32xbf16>
    %18 = arith.truncf %14 : vector<8x32xf32> to vector<8x32xbf16>
    %c0_11 = arith.constant 0 : index
    %c0_12 = arith.constant 0 : index
    %c0_13 = arith.constant 0 : index
    %c0_14 = arith.constant 0 : index
    %19 = vector.load %arg3[%c0_11, %c0_12, %c0_13, %c0_14] : memref<2x4x32x32xbf16, #tpu.memory_space<vmem>>, vector<1x1x32x32xbf16>
    %20 = vector.shape_cast %19 : vector<1x1x32x32xbf16> to vector<32x32xbf16>
    %cst_15 = arith.constant dense<0.000000e+00> : vector<8x32xf32>
    %21 = tpu.matmul %17, %20, %cst_15 {dimension_numbers = #tpu.dot_dimension_numbers<[1], [0], [0], [1], [0, 0, 1, 1], [], []>} : vector<8x32xbf16>, vector<32x32xbf16>, vector<8x32xf32> -> vector<8x32xf32>
    %c0_16 = arith.constant 0 : index
    %c0_17 = arith.constant 0 : index
    %c0_18 = arith.constant 0 : index
    %c0_19 = arith.constant 0 : index
    %22 = vector.load %arg4[%c0_16, %c0_17, %c0_18, %c0_19] : memref<2x4x32x32xbf16, #tpu.memory_space<vmem>>, vector<1x1x32x32xbf16>
    %23 = vector.shape_cast %22 : vector<1x1x32x32xbf16> to vector<32x32xbf16>
    %cst_20 = arith.constant dense<0.000000e+00> : vector<8x32xf32>
    %24 = tpu.matmul %18, %23, %cst_20 {dimension_numbers = #tpu.dot_dimension_numbers<[1], [0], [0], [1], [0, 0, 1, 1], [], []>} : vector<8x32xbf16>, vector<32x32xbf16>, vector<8x32xf32> -> vector<8x32xf32>
    %25 = arith.addf %21, %24 : vector<8x32xf32>
    %c0_21 = arith.constant 0 : index
    %c0_22 = arith.constant 0 : index
    %c0_23 = arith.constant 0 : index
    %c0_24 = arith.constant 0 : index
    %26 = vector.load %arg5[%c0_21, %c0_22, %c0_23, %c0_24] : memref<2x4x1x32xf32, #tpu.memory_space<vmem>>, vector<1x1x1x32xf32>
    %27 = vector.shape_cast %26 : vector<1x1x1x32xf32> to vector<1x32xf32>
    %28 = vector.broadcast %27 : vector<1x32xf32> to vector<8x32xf32>
    %29 = arith.addf %25, %28 : vector<8x32xf32>
    %30 = arith.negf %29 : vector<8x32xf32>
    %31 = math.exp %30 : vector<8x32xf32>
    %cst_25 = arith.constant 1.000000e+00 : f32
    %32 = vector.broadcast %cst_25 : f32 to vector<8x32xf32>
    %33 = arith.addf %32, %31 : vector<8x32xf32>
    %34 = arith.divf %32, %33 : vector<8x32xf32>
    %c0_26 = arith.constant 0 : index
    %c1 = arith.constant 1 : index
    %c0_27 = arith.constant 0 : index
    %c0_28 = arith.constant 0 : index
    %35 = vector.load %arg3[%c0_26, %c1, %c0_27, %c0_28] : memref<2x4x32x32xbf16, #tpu.memory_space<vmem>>, vector<1x1x32x32xbf16>
    %36 = vector.shape_cast %35 : vector<1x1x32x32xbf16> to vector<32x32xbf16>
    %cst_29 = arith.constant dense<0.000000e+00> : vector<8x32xf32>
    %37 = tpu.matmul %17, %36, %cst_29 {dimension_numbers = #tpu.dot_dimension_numbers<[1], [0], [0], [1], [0, 0, 1, 1], [], []>} : vector<8x32xbf16>, vector<32x32xbf16>, vector<8x32xf32> -> vector<8x32xf32>
    %c0_30 = arith.constant 0 : index
    %c1_31 = arith.constant 1 : index
    %c0_32 = arith.constant 0 : index
    %c0_33 = arith.constant 0 : index
    %38 = vector.load %arg4[%c0_30, %c1_31, %c0_32, %c0_33] : memref<2x4x32x32xbf16, #tpu.memory_space<vmem>>, vector<1x1x32x32xbf16>
    %39 = vector.shape_cast %38 : vector<1x1x32x32xbf16> to vector<32x32xbf16>
    %cst_34 = arith.constant dense<0.000000e+00> : vector<8x32xf32>
    %40 = tpu.matmul %18, %39, %cst_34 {dimension_numbers = #tpu.dot_dimension_numbers<[1], [0], [0], [1], [0, 0, 1, 1], [], []>} : vector<8x32xbf16>, vector<32x32xbf16>, vector<8x32xf32> -> vector<8x32xf32>
    %41 = arith.addf %37, %40 : vector<8x32xf32>
    %c0_35 = arith.constant 0 : index
    %c1_36 = arith.constant 1 : index
    %c0_37 = arith.constant 0 : index
    %c0_38 = arith.constant 0 : index
    %42 = vector.load %arg5[%c0_35, %c1_36, %c0_37, %c0_38] : memref<2x4x1x32xf32, #tpu.memory_space<vmem>>, vector<1x1x1x32xf32>
    %43 = vector.shape_cast %42 : vector<1x1x1x32xf32> to vector<1x32xf32>
    %44 = vector.broadcast %43 : vector<1x32xf32> to vector<8x32xf32>
    %45 = arith.addf %41, %44 : vector<8x32xf32>
    %46 = arith.negf %45 : vector<8x32xf32>
    %47 = math.exp %46 : vector<8x32xf32>
    %cst_39 = arith.constant 1.000000e+00 : f32
    %48 = vector.broadcast %cst_39 : f32 to vector<8x32xf32>
    %49 = arith.addf %48, %47 : vector<8x32xf32>
    %50 = arith.divf %48, %49 : vector<8x32xf32>
    %c0_40 = arith.constant 0 : index
    %c2 = arith.constant 2 : index
    %c0_41 = arith.constant 0 : index
    %c0_42 = arith.constant 0 : index
    %51 = vector.load %arg3[%c0_40, %c2, %c0_41, %c0_42] : memref<2x4x32x32xbf16, #tpu.memory_space<vmem>>, vector<1x1x32x32xbf16>
    %52 = vector.shape_cast %51 : vector<1x1x32x32xbf16> to vector<32x32xbf16>
    %cst_43 = arith.constant dense<0.000000e+00> : vector<8x32xf32>
    %53 = tpu.matmul %17, %52, %cst_43 {dimension_numbers = #tpu.dot_dimension_numbers<[1], [0], [0], [1], [0, 0, 1, 1], [], []>} : vector<8x32xbf16>, vector<32x32xbf16>, vector<8x32xf32> -> vector<8x32xf32>
    %c0_44 = arith.constant 0 : index
    %c2_45 = arith.constant 2 : index
    %c0_46 = arith.constant 0 : index
    %c0_47 = arith.constant 0 : index
    %54 = vector.load %arg4[%c0_44, %c2_45, %c0_46, %c0_47] : memref<2x4x32x32xbf16, #tpu.memory_space<vmem>>, vector<1x1x32x32xbf16>
    %55 = vector.shape_cast %54 : vector<1x1x32x32xbf16> to vector<32x32xbf16>
    %cst_48 = arith.constant dense<0.000000e+00> : vector<8x32xf32>
    %56 = tpu.matmul %18, %55, %cst_48 {dimension_numbers = #tpu.dot_dimension_numbers<[1], [0], [0], [1], [0, 0, 1, 1], [], []>} : vector<8x32xbf16>, vector<32x32xbf16>, vector<8x32xf32> -> vector<8x32xf32>
    %57 = arith.addf %53, %56 : vector<8x32xf32>
    %c0_49 = arith.constant 0 : index
    %c2_50 = arith.constant 2 : index
    %c0_51 = arith.constant 0 : index
    %c0_52 = arith.constant 0 : index
    %58 = vector.load %arg5[%c0_49, %c2_50, %c0_51, %c0_52] : memref<2x4x1x32xf32, #tpu.memory_space<vmem>>, vector<1x1x1x32xf32>
    %59 = vector.shape_cast %58 : vector<1x1x1x32xf32> to vector<1x32xf32>
    %60 = vector.broadcast %59 : vector<1x32xf32> to vector<8x32xf32>
    %61 = arith.addf %57, %60 : vector<8x32xf32>
    %62 = math.tanh %61 : vector<8x32xf32>
    %c0_53 = arith.constant 0 : index
    %c3 = arith.constant 3 : index
    %c0_54 = arith.constant 0 : index
    %c0_55 = arith.constant 0 : index
    %63 = vector.load %arg3[%c0_53, %c3, %c0_54, %c0_55] : memref<2x4x32x32xbf16, #tpu.memory_space<vmem>>, vector<1x1x32x32xbf16>
    %64 = vector.shape_cast %63 : vector<1x1x32x32xbf16> to vector<32x32xbf16>
    %cst_56 = arith.constant dense<0.000000e+00> : vector<8x32xf32>
    %65 = tpu.matmul %17, %64, %cst_56 {dimension_numbers = #tpu.dot_dimension_numbers<[1], [0], [0], [1], [0, 0, 1, 1], [], []>} : vector<8x32xbf16>, vector<32x32xbf16>, vector<8x32xf32> -> vector<8x32xf32>
    %c0_57 = arith.constant 0 : index
    %c3_58 = arith.constant 3 : index
    %c0_59 = arith.constant 0 : index
    %c0_60 = arith.constant 0 : index
    %66 = vector.load %arg4[%c0_57, %c3_58, %c0_59, %c0_60] : memref<2x4x32x32xbf16, #tpu.memory_space<vmem>>, vector<1x1x32x32xbf16>
    %67 = vector.shape_cast %66 : vector<1x1x32x32xbf16> to vector<32x32xbf16>
    %cst_61 = arith.constant dense<0.000000e+00> : vector<8x32xf32>
    %68 = tpu.matmul %18, %67, %cst_61 {dimension_numbers = #tpu.dot_dimension_numbers<[1], [0], [0], [1], [0, 0, 1, 1], [], []>} : vector<8x32xbf16>, vector<32x32xbf16>, vector<8x32xf32> -> vector<8x32xf32>
    %69 = arith.addf %65, %68 : vector<8x32xf32>
    %c0_62 = arith.constant 0 : index
    %c3_63 = arith.constant 3 : index
    %c0_64 = arith.constant 0 : index
    %c0_65 = arith.constant 0 : index
    %70 = vector.load %arg5[%c0_62, %c3_63, %c0_64, %c0_65] : memref<2x4x1x32xf32, #tpu.memory_space<vmem>>, vector<1x1x1x32xf32>
    %71 = vector.shape_cast %70 : vector<1x1x1x32xf32> to vector<1x32xf32>
    %72 = vector.broadcast %71 : vector<1x32xf32> to vector<8x32xf32>
    %73 = arith.addf %69, %72 : vector<8x32xf32>
    %74 = arith.negf %73 : vector<8x32xf32>
    %75 = math.exp %74 : vector<8x32xf32>
    %cst_66 = arith.constant 1.000000e+00 : f32
    %76 = vector.broadcast %cst_66 : f32 to vector<8x32xf32>
    %77 = arith.addf %76, %75 : vector<8x32xf32>
    %78 = arith.divf %76, %77 : vector<8x32xf32>
    %79 = arith.mulf %50, %16 : vector<8x32xf32>
    %80 = arith.mulf %34, %62 : vector<8x32xf32>
    %81 = arith.addf %79, %80 : vector<8x32xf32>
    %82 = math.tanh %81 : vector<8x32xf32>
    %83 = arith.mulf %78, %82 : vector<8x32xf32>
    %c0_67 = arith.constant 0 : index
    %c0_68 = arith.constant 0 : index
    %c0_69 = arith.constant 0 : index
    %84 = vector.load %arg11[%c0_67, %c0_68, %c0_69] : memref<2x8x32xf32, #tpu.memory_space<vmem>>, vector<1x8x32xf32>
    %85 = vector.shape_cast %84 : vector<1x8x32xf32> to vector<8x32xf32>
    %86 = vector.shape_cast %83 : vector<8x32xf32> to vector<1x8x32xf32>
    tpu.vector_store %arg11[%c0_67, %c0_68, %c0_69], %86 {strides = array<i32>} : memref<2x8x32xf32, #tpu.memory_space<vmem>>, vector<1x8x32xf32>,
    %c0_70 = arith.constant 0 : index
    %c0_71 = arith.constant 0 : index
    %c0_72 = arith.constant 0 : index
    %87 = vector.load %arg12[%c0_70, %c0_71, %c0_72] : memref<2x8x32xf32, #tpu.memory_space<vmem>>, vector<1x8x32xf32>
    %88 = vector.shape_cast %87 : vector<1x8x32xf32> to vector<8x32xf32>
    %89 = vector.shape_cast %81 : vector<8x32xf32> to vector<1x8x32xf32>
    tpu.vector_store %arg12[%c0_70, %c0_71, %c0_72], %89 {strides = array<i32>} : memref<2x8x32xf32, #tpu.memory_space<vmem>>, vector<1x8x32xf32>,
    %c1_73 = arith.constant 1 : index
    %c0_74 = arith.constant 0 : index
    %c0_75 = arith.constant 0 : index
    %90 = vector.load %arg11[%c1_73, %c0_74, %c0_75] : memref<2x8x32xf32, #tpu.memory_space<vmem>>, vector<1x8x32xf32>
    %91 = vector.shape_cast %90 : vector<1x8x32xf32> to vector<8x32xf32>
    %c1_76 = arith.constant 1 : index
    %c0_77 = arith.constant 0 : index
    %c0_78 = arith.constant 0 : index
    %92 = vector.load %arg12[%c1_76, %c0_77, %c0_78] : memref<2x8x32xf32, #tpu.memory_space<vmem>>, vector<1x8x32xf32>
    %93 = vector.shape_cast %92 : vector<1x8x32xf32> to vector<8x32xf32>
    %94 = arith.truncf %83 : vector<8x32xf32> to vector<8x32xbf16>
    %95 = arith.truncf %91 : vector<8x32xf32> to vector<8x32xbf16>
    %c1_79 = arith.constant 1 : index
    %c0_80 = arith.constant 0 : index
    %c0_81 = arith.constant 0 : index
    %c0_82 = arith.constant 0 : index
    %96 = vector.load %arg3[%c1_79, %c0_80, %c0_81, %c0_82] : memref<2x4x32x32xbf16, #tpu.memory_space<vmem>>, vector<1x1x32x32xbf16>
    %97 = vector.shape_cast %96 : vector<1x1x32x32xbf16> to vector<32x32xbf16>
    %cst_83 = arith.constant dense<0.000000e+00> : vector<8x32xf32>
    %98 = tpu.matmul %94, %97, %cst_83 {dimension_numbers = #tpu.dot_dimension_numbers<[1], [0], [0], [1], [0, 0, 1, 1], [], []>} : vector<8x32xbf16>, vector<32x32xbf16>, vector<8x32xf32> -> vector<8x32xf32>
    %c1_84 = arith.constant 1 : index
    %c0_85 = arith.constant 0 : index
    %c0_86 = arith.constant 0 : index
    %c0_87 = arith.constant 0 : index
    %99 = vector.load %arg4[%c1_84, %c0_85, %c0_86, %c0_87] : memref<2x4x32x32xbf16, #tpu.memory_space<vmem>>, vector<1x1x32x32xbf16>
    %100 = vector.shape_cast %99 : vector<1x1x32x32xbf16> to vector<32x32xbf16>
    %cst_88 = arith.constant dense<0.000000e+00> : vector<8x32xf32>
    %101 = tpu.matmul %95, %100, %cst_88 {dimension_numbers = #tpu.dot_dimension_numbers<[1], [0], [0], [1], [0, 0, 1, 1], [], []>} : vector<8x32xbf16>, vector<32x32xbf16>, vector<8x32xf32> -> vector<8x32xf32>
    %102 = arith.addf %98, %101 : vector<8x32xf32>
    %c1_89 = arith.constant 1 : index
    %c0_90 = arith.constant 0 : index
    %c0_91 = arith.constant 0 : index
    %c0_92 = arith.constant 0 : index
    %103 = vector.load %arg5[%c1_89, %c0_90, %c0_91, %c0_92] : memref<2x4x1x32xf32, #tpu.memory_space<vmem>>, vector<1x1x1x32xf32>
    %104 = vector.shape_cast %103 : vector<1x1x1x32xf32> to vector<1x32xf32>
    %105 = vector.broadcast %104 : vector<1x32xf32> to vector<8x32xf32>
    %106 = arith.addf %102, %105 : vector<8x32xf32>
    %107 = arith.negf %106 : vector<8x32xf32>
    %108 = math.exp %107 : vector<8x32xf32>
    %cst_93 = arith.constant 1.000000e+00 : f32
    %109 = vector.broadcast %cst_93 : f32 to vector<8x32xf32>
    %110 = arith.addf %109, %108 : vector<8x32xf32>
    %111 = arith.divf %109, %110 : vector<8x32xf32>
    %c1_94 = arith.constant 1 : index
    %c1_95 = arith.constant 1 : index
    %c0_96 = arith.constant 0 : index
    %c0_97 = arith.constant 0 : index
    %112 = vector.load %arg3[%c1_94, %c1_95, %c0_96, %c0_97] : memref<2x4x32x32xbf16, #tpu.memory_space<vmem>>, vector<1x1x32x32xbf16>
    %113 = vector.shape_cast %112 : vector<1x1x32x32xbf16> to vector<32x32xbf16>
    %cst_98 = arith.constant dense<0.000000e+00> : vector<8x32xf32>
    %114 = tpu.matmul %94, %113, %cst_98 {dimension_numbers = #tpu.dot_dimension_numbers<[1], [0], [0], [1], [0, 0, 1, 1], [], []>} : vector<8x32xbf16>, vector<32x32xbf16>, vector<8x32xf32> -> vector<8x32xf32>
    %c1_99 = arith.constant 1 : index
    %c1_100 = arith.constant 1 : index
    %c0_101 = arith.constant 0 : index
    %c0_102 = arith.constant 0 : index
    %115 = vector.load %arg4[%c1_99, %c1_100, %c0_101, %c0_102] : memref<2x4x32x32xbf16, #tpu.memory_space<vmem>>, vector<1x1x32x32xbf16>
    %116 = vector.shape_cast %115 : vector<1x1x32x32xbf16> to vector<32x32xbf16>
    %cst_103 = arith.constant dense<0.000000e+00> : vector<8x32xf32>
    %117 = tpu.matmul %95, %116, %cst_103 {dimension_numbers = #tpu.dot_dimension_numbers<[1], [0], [0], [1], [0, 0, 1, 1], [], []>} : vector<8x32xbf16>, vector<32x32xbf16>, vector<8x32xf32> -> vector<8x32xf32>
    %118 = arith.addf %114, %117 : vector<8x32xf32>
    %c1_104 = arith.constant 1 : index
    %c1_105 = arith.constant 1 : index
    %c0_106 = arith.constant 0 : index
    %c0_107 = arith.constant 0 : index
    %119 = vector.load %arg5[%c1_104, %c1_105, %c0_106, %c0_107] : memref<2x4x1x32xf32, #tpu.memory_space<vmem>>, vector<1x1x1x32xf32>
    %120 = vector.shape_cast %119 : vector<1x1x1x32xf32> to vector<1x32xf32>
    %121 = vector.broadcast %120 : vector<1x32xf32> to vector<8x32xf32>
    %122 = arith.addf %118, %121 : vector<8x32xf32>
    %123 = arith.negf %122 : vector<8x32xf32>
    %124 = math.exp %123 : vector<8x32xf32>
    %cst_108 = arith.constant 1.000000e+00 : f32
    %125 = vector.broadcast %cst_108 : f32 to vector<8x32xf32>
    %126 = arith.addf %125, %124 : vector<8x32xf32>
    %127 = arith.divf %125, %126 : vector<8x32xf32>
    %c1_109 = arith.constant 1 : index
    %c2_110 = arith.constant 2 : index
    %c0_111 = arith.constant 0 : index
    %c0_112 = arith.constant 0 : index
    %128 = vector.load %arg3[%c1_109, %c2_110, %c0_111, %c0_112] : memref<2x4x32x32xbf16, #tpu.memory_space<vmem>>, vector<1x1x32x32xbf16>
    %129 = vector.shape_cast %128 : vector<1x1x32x32xbf16> to vector<32x32xbf16>
    %cst_113 = arith.constant dense<0.000000e+00> : vector<8x32xf32>
    %130 = tpu.matmul %94, %129, %cst_113 {dimension_numbers = #tpu.dot_dimension_numbers<[1], [0], [0], [1], [0, 0, 1, 1], [], []>} : vector<8x32xbf16>, vector<32x32xbf16>, vector<8x32xf32> -> vector<8x32xf32>
    %c1_114 = arith.constant 1 : index
    %c2_115 = arith.constant 2 : index
    %c0_116 = arith.constant 0 : index
    %c0_117 = arith.constant 0 : index
    %131 = vector.load %arg4[%c1_114, %c2_115, %c0_116, %c0_117] : memref<2x4x32x32xbf16, #tpu.memory_space<vmem>>, vector<1x1x32x32xbf16>
    %132 = vector.shape_cast %131 : vector<1x1x32x32xbf16> to vector<32x32xbf16>
    %cst_118 = arith.constant dense<0.000000e+00> : vector<8x32xf32>
    %133 = tpu.matmul %95, %132, %cst_118 {dimension_numbers = #tpu.dot_dimension_numbers<[1], [0], [0], [1], [0, 0, 1, 1], [], []>} : vector<8x32xbf16>, vector<32x32xbf16>, vector<8x32xf32> -> vector<8x32xf32>
    %134 = arith.addf %130, %133 : vector<8x32xf32>
    %c1_119 = arith.constant 1 : index
    %c2_120 = arith.constant 2 : index
    %c0_121 = arith.constant 0 : index
    %c0_122 = arith.constant 0 : index
    %135 = vector.load %arg5[%c1_119, %c2_120, %c0_121, %c0_122] : memref<2x4x1x32xf32, #tpu.memory_space<vmem>>, vector<1x1x1x32xf32>
    %136 = vector.shape_cast %135 : vector<1x1x1x32xf32> to vector<1x32xf32>
    %137 = vector.broadcast %136 : vector<1x32xf32> to vector<8x32xf32>
    %138 = arith.addf %134, %137 : vector<8x32xf32>
    %139 = math.tanh %138 : vector<8x32xf32>
    %c1_123 = arith.constant 1 : index
    %c3_124 = arith.constant 3 : index
    %c0_125 = arith.constant 0 : index
    %c0_126 = arith.constant 0 : index
    %140 = vector.load %arg3[%c1_123, %c3_124, %c0_125, %c0_126] : memref<2x4x32x32xbf16, #tpu.memory_space<vmem>>, vector<1x1x32x32xbf16>
    %141 = vector.shape_cast %140 : vector<1x1x32x32xbf16> to vector<32x32xbf16>
    %cst_127 = arith.constant dense<0.000000e+00> : vector<8x32xf32>
    %142 = tpu.matmul %94, %141, %cst_127 {dimension_numbers = #tpu.dot_dimension_numbers<[1], [0], [0], [1], [0, 0, 1, 1], [], []>} : vector<8x32xbf16>, vector<32x32xbf16>, vector<8x32xf32> -> vector<8x32xf32>
    %c1_128 = arith.constant 1 : index
    %c3_129 = arith.constant 3 : index
    %c0_130 = arith.constant 0 : index
    %c0_131 = arith.constant 0 : index
    %143 = vector.load %arg4[%c1_128, %c3_129, %c0_130, %c0_131] : memref<2x4x32x32xbf16, #tpu.memory_space<vmem>>, vector<1x1x32x32xbf16>
    %144 = vector.shape_cast %143 : vector<1x1x32x32xbf16> to vector<32x32xbf16>
    %cst_132 = arith.constant dense<0.000000e+00> : vector<8x32xf32>
    %145 = tpu.matmul %95, %144, %cst_132 {dimension_numbers = #tpu.dot_dimension_numbers<[1], [0], [0], [1], [0, 0, 1, 1], [], []>} : vector<8x32xbf16>, vector<32x32xbf16>, vector<8x32xf32> -> vector<8x32xf32>
    %146 = arith.addf %142, %145 : vector<8x32xf32>
    %c1_133 = arith.constant 1 : index
    %c3_134 = arith.constant 3 : index
    %c0_135 = arith.constant 0 : index
    %c0_136 = arith.constant 0 : index
    %147 = vector.load %arg5[%c1_133, %c3_134, %c0_135, %c0_136] : memref<2x4x1x32xf32, #tpu.memory_space<vmem>>, vector<1x1x1x32xf32>
    %148 = vector.shape_cast %147 : vector<1x1x1x32xf32> to vector<1x32xf32>
    %149 = vector.broadcast %148 : vector<1x32xf32> to vector<8x32xf32>
    %150 = arith.addf %146, %149 : vector<8x32xf32>
    %151 = arith.negf %150 : vector<8x32xf32>
    %152 = math.exp %151 : vector<8x32xf32>
    %cst_137 = arith.constant 1.000000e+00 : f32
    %153 = vector.broadcast %cst_137 : f32 to vector<8x32xf32>
    %154 = arith.addf %153, %152 : vector<8x32xf32>
    %155 = arith.divf %153, %154 : vector<8x32xf32>
    %156 = arith.mulf %127, %93 : vector<8x32xf32>
    %157 = arith.mulf %111, %139 : vector<8x32xf32>
    %158 = arith.addf %156, %157 : vector<8x32xf32>
    %159 = math.tanh %158 : vector<8x32xf32>
    %160 = arith.mulf %155, %159 : vector<8x32xf32>
    %c1_138 = arith.constant 1 : index
    %c0_139 = arith.constant 0 : index
    %c0_140 = arith.constant 0 : index
    %161 = vector.load %arg11[%c1_138, %c0_139, %c0_140] : memref<2x8x32xf32, #tpu.memory_space<vmem>>, vector<1x8x32xf32>
    %162 = vector.shape_cast %161 : vector<1x8x32xf32> to vector<8x32xf32>
    %163 = vector.shape_cast %160 : vector<8x32xf32> to vector<1x8x32xf32>
    tpu.vector_store %arg11[%c1_138, %c0_139, %c0_140], %163 {strides = array<i32>} : memref<2x8x32xf32, #tpu.memory_space<vmem>>, vector<1x8x32xf32>,
    %c1_141 = arith.constant 1 : index
    %c0_142 = arith.constant 0 : index
    %c0_143 = arith.constant 0 : index
    %164 = vector.load %arg12[%c1_141, %c0_142, %c0_143] : memref<2x8x32xf32, #tpu.memory_space<vmem>>, vector<1x8x32xf32>
    %165 = vector.shape_cast %164 : vector<1x8x32xf32> to vector<8x32xf32>
    %166 = vector.shape_cast %158 : vector<8x32xf32> to vector<1x8x32xf32>
    tpu.vector_store %arg12[%c1_141, %c0_142, %c0_143], %166 {strides = array<i32>} : memref<2x8x32xf32, #tpu.memory_space<vmem>>, vector<1x8x32xf32>,
    %167 = arith.truncf %160 : vector<8x32xf32> to vector<8x32xbf16>
    %c0_144 = arith.constant 0 : index
    %c0_145 = arith.constant 0 : index
    %168 = vector.load %arg8[%c0_144, %c0_145] : memref<32x128xbf16, #tpu.memory_space<vmem>>, vector<32x128xbf16>
    %cst_146 = arith.constant dense<0.000000e+00> : vector<8x128xf32>
    %169 = tpu.matmul %167, %168, %cst_146 {dimension_numbers = #tpu.dot_dimension_numbers<[1], [0], [0], [1], [0, 0, 1, 1], [], []>} : vector<8x32xbf16>, vector<32x128xbf16>, vector<8x128xf32> -> vector<8x128xf32>
    %c0_147 = arith.constant 0 : index
    %c0_148 = arith.constant 0 : index
    %170 = vector.load %arg9[%c0_147, %c0_148] : memref<1x128xf32, #tpu.memory_space<vmem>>, vector<1x128xf32>
    %171 = vector.broadcast %170 : vector<1x128xf32> to vector<8x128xf32>
    %172 = arith.addf %169, %171 : vector<8x128xf32>
    %c0_149 = arith.constant 0 : index
    %c0_150 = arith.constant 0 : index
    %c0_151 = arith.constant 0 : index
    %173 = vector.load %arg10[%c0_149, %c0_150, %c0_151] : memref<1x8x128xf32, #tpu.memory_space<vmem>>, vector<1x8x128xf32>
    %174 = vector.shape_cast %173 : vector<1x8x128xf32> to vector<8x128xf32>
    %175 = vector.shape_cast %172 : vector<8x128xf32> to vector<1x8x128xf32>
    tpu.vector_store %arg10[%c0_149, %c0_150, %c0_151], %175 {strides = array<i32>} : memref<1x8x128xf32, #tpu.memory_space<vmem>>, vector<1x8x128xf32>,
    return
  }
  func.func @transform_0(%arg0: i32) -> (i32, i32, i32) {
    %c0_i32 = arith.constant 0 : i32
    %c0_i32_0 = arith.constant 0 : i32
    %c0_i32_1 = arith.constant 0 : i32
    return %arg0, %c0_i32, %c0_i32_0 : i32, i32, i32
  }
  func.func @transform_1(%arg0: i32) -> (i32, i32) {
    %c0_i32 = arith.constant 0 : i32
    %c0_i32_0 = arith.constant 0 : i32
    %c0_i32_1 = arith.constant 0 : i32
    return %c0_i32, %c0_i32_0 : i32, i32
  }
  func.func @transform_2(%arg0: i32) -> (i32, i32, i32, i32) {
    %c0_i32 = arith.constant 0 : i32
    %c0_i32_0 = arith.constant 0 : i32
    %c0_i32_1 = arith.constant 0 : i32
    %c0_i32_2 = arith.constant 0 : i32
    %c0_i32_3 = arith.constant 0 : i32
    return %c0_i32, %c0_i32_0, %c0_i32_1, %c0_i32_2 : i32, i32, i32, i32
  }
  func.func @transform_3(%arg0: i32) -> (i32, i32, i32, i32) {
    %c0_i32 = arith.constant 0 : i32
    %c0_i32_0 = arith.constant 0 : i32
    %c0_i32_1 = arith.constant 0 : i32
    %c0_i32_2 = arith.constant 0 : i32
    %c0_i32_3 = arith.constant 0 : i32
    return %c0_i32, %c0_i32_0, %c0_i32_1, %c0_i32_2 : i32, i32, i32, i32
  }
  func.func @transform_4(%arg0: i32) -> (i32, i32, i32, i32) {
    %c0_i32 = arith.constant 0 : i32
    %c0_i32_0 = arith.constant 0 : i32
    %c0_i32_1 = arith.constant 0 : i32
    %c0_i32_2 = arith.constant 0 : i32
    %c0_i32_3 = arith.constant 0 : i32
    return %c0_i32, %c0_i32_0, %c0_i32_1, %c0_i32_2 : i32, i32, i32, i32
  }
  func.func @transform_5(%arg0: i32) -> (i32, i32, i32) {
    %c0_i32 = arith.constant 0 : i32
    %c0_i32_0 = arith.constant 0 : i32
    %c0_i32_1 = arith.constant 0 : i32
    %c0_i32_2 = arith.constant 0 : i32
    return %c0_i32, %c0_i32_0, %c0_i32_1 : i32, i32, i32
  }
  func.func @transform_6(%arg0: i32) -> (i32, i32, i32) {
    %c0_i32 = arith.constant 0 : i32
    %c0_i32_0 = arith.constant 0 : i32
    %c0_i32_1 = arith.constant 0 : i32
    %c0_i32_2 = arith.constant 0 : i32
    return %c0_i32, %c0_i32_0, %c0_i32_1 : i32, i32, i32
  }
  func.func @transform_7(%arg0: i32) -> (i32, i32) {
    %c0_i32 = arith.constant 0 : i32
    %c0_i32_0 = arith.constant 0 : i32
    %c0_i32_1 = arith.constant 0 : i32
    return %c0_i32, %c0_i32_0 : i32, i32
  }
  func.func @transform_8(%arg0: i32) -> (i32, i32) {
    %c0_i32 = arith.constant 0 : i32
    %c0_i32_0 = arith.constant 0 : i32
    %c0_i32_1 = arith.constant 0 : i32
    return %c0_i32, %c0_i32_0 : i32, i32
  }
  func.func @transform_9(%arg0: i32) -> (i32, i32, i32) {
    %c0_i32 = arith.constant 0 : i32
    %c0_i32_0 = arith.constant 0 : i32
    %c0_i32_1 = arith.constant 0 : i32
    return %arg0, %c0_i32, %c0_i32_0 : i32, i32, i32
  }
  func.func @transform_10(%arg0: i32) -> (i32, i32, i32) {
    %c0_i32 = arith.constant 0 : i32
    %c0_i32_0 = arith.constant 0 : i32
    %c0_i32_1 = arith.constant 0 : i32
    %c0_i32_2 = arith.constant 0 : i32
    return %c0_i32, %c0_i32_0, %c0_i32_1 : i32, i32, i32
  }
  func.func @transform_11(%arg0: i32) -> (i32, i32, i32) {
    %c0_i32 = arith.constant 0 : i32
    %c0_i32_0 = arith.constant 0 : i32
    %c0_i32_1 = arith.constant 0 : i32
    %c0_i32_2 = arith.constant 0 : i32
    return %c0_i32, %c0_i32_0, %c0_i32_1 : i32, i32, i32
  }
}

</mosaic_0001>

<llo_original>
// kernel: decoder_forward_seq.1
$region0: #{decoder_forward_seq.1}
  #allocation0 [shape = 'u32[]', space=smem, size = 0x4, offset = 0x4, fixed_abs, tag = 'smem constant byte address 0x4 - core index']
  #allocation1 [shape = 'u32[144,128]{1,0:T(1,128)}', space=vmem, size = 0x12000, scoped, tag = 'internal scratch']
  %s0 = inlined_call_operand.vmem [shape: s32[1,8,1], index: 0, kind: input, shape index: {}]
  %s1 = inlined_call_operand.vmem [shape: bf16[128,32], index: 1, kind: input, shape index: {}]
  %s2 = inlined_call_operand.vmem [shape: bf16[2,4,32,32], index: 2, kind: input, shape index: {}]
  %s3 = inlined_call_operand.hbm [shape: bf16[2,4,32,32], index: 3, kind: input, shape index: {}]
  %s4 = inlined_call_operand.vmem [shape: f32[2,4,1,32], index: 4, kind: input, shape index: {}]
  %s5 = inlined_call_operand.vmem [shape: f32[2,8,32], index: 5, kind: input, shape index: {}, may-alias: {5,10}]
  %s6 = inlined_call_operand.vmem [shape: f32[2,8,32], index: 6, kind: input, shape index: {}, may-alias: {6,11}]
  %s7 = inlined_call_operand.hbm [shape: bf16[32,128], index: 7, kind: input, shape index: {}]
  %s8 = inlined_call_operand.vmem [shape: f32[1,128], index: 8, kind: input, shape index: {}]
  %s9 = inlined_call_operand.hbm [shape: f32[1,8,128], index: 9, kind: output, shape index: {0}]
  %s10 = inlined_call_operand.vmem [shape: f32[2,8,32], index: 10, kind: output, shape index: {1}, may-alias: {5,10}]
  %s11 = inlined_call_operand.vmem [shape: f32[2,8,32], index: 11, kind: output, shape index: {2}, may-alias: {6,11}]
  %12 = xla_tuple %s9, %s10, %s11
  %s13 = sld [smem:[#allocation0]]
  $region74: #{decoder_forward_seq.1} parent=0
    _
  %s15 = ssub.s32 1, %s13
  %s16 = scalar_select 0, %s15, %s13
  $region1: #{decoder_forward_seq.1} parent=0
    #allocation2 [shape = 'u8[65536]{0}', space=vmem, size = 0x10000, scoped, tag = 'input window, operand 3, single buffered']
    #allocation3 [shape = 's32[1]{0}', space=sflag, size = 0x4, scoped, tag = 'scoped memory for decoder_forward_seq.1']
    #allocation4 [shape = 's32[1]{0}', space=sflag, size = 0x4, scoped, tag = 'scoped memory for decoder_forward_seq.1']
    #allocation5 [shape = 'u8[8192]{0}', space=vmem, size = 0x2000, scoped, tag = 'input window, operand 7, single buffered']
    #allocation6 [shape = 's32[1]{0}', space=sflag, size = 0x4, scoped, tag = 'scoped memory for decoder_forward_seq.1']
    #allocation7 [shape = 'u8[4096]{0}', space=vmem, size = 0x1000, scoped, tag = 'output window, operand 0, single buffered']
    %17 = vsyncpa [#allocation3], 0
    %18 = vsyncpa [#allocation6], 0
    %19 = vsyncpa [#allocation4], 0
    // Predicated region
    $region2: #{decoder_forward_seq.1} parent=1 // pred_check
      _
    $region3: #{decoder_forward_seq.1} parent=1 // pred_check_branch
      %21 = sbr.rel (0) target = $region5
    $region4: #{decoder_forward_seq.1} parent=1 // pred_region
      _
    $region5: #{decoder_forward_seq.1} parent=1 // pred_fallthru
      _
    // Predicated region
    $region6: #{decoder_forward_seq.1} parent=1 // pred_check
      _
    $region7: #{decoder_forward_seq.1} parent=1 // pred_check_branch
      %23 = sbr.rel (0) target = $region9
    $region8: #{decoder_forward_seq.1} parent=1 // pred_region
      _
    $region9: #{decoder_forward_seq.1} parent=1 // pred_fallthru
      _
    // Predicated region
    $region10: #{decoder_forward_seq.1} parent=1 // pred_check
      _
    $region11: #{decoder_forward_seq.1} parent=1 // pred_check_branch
      %25 = sbr.rel (0) target = $region13
    $region12: #{decoder_forward_seq.1} parent=1 // pred_region
      _
    $region13: #{decoder_forward_seq.1} parent=1 // pred_fallthru
      _
    // Predicated region
    $region14: #{decoder_forward_seq.1} parent=1 // pred_check
      _
    $region15: #{decoder_forward_seq.1} parent=1 // pred_check_branch
      %27 = sbr.rel (0) target = $region17
    $region16: #{decoder_forward_seq.1} parent=1 // pred_region
      %s29 = ssub.s32 2048, 2048
      %30 = vsyncadd [#allocation3], %s29
      %s31 = sshll.u32 [#allocation2], 4
      %s32 = int_to_ptr.vmem [resolvable:$true] %s31
      %37 = dma.hbm_to_vmem [thread:$0]  %s3, 2048, %s32, [#allocation3], 64, 64, 4
    $region17: #{decoder_forward_seq.1} parent=1 // pred_fallthru
      _
    // Predicated region
    $region18: #{decoder_forward_seq.1} parent=1 // pred_check
      _
    $region19: #{decoder_forward_seq.1} parent=1 // pred_check_branch
      %39 = sbr.rel (0) target = $region21
    $region20: #{decoder_forward_seq.1} parent=1 // pred_region
      _
    $region21: #{decoder_forward_seq.1} parent=1 // pred_fallthru
      _
    // Predicated region
    $region22: #{decoder_forward_seq.1} parent=1 // pred_check
      _
    $region23: #{decoder_forward_seq.1} parent=1 // pred_check_branch
      %41 = sbr.rel (0) target = $region25
    $region24: #{decoder_forward_seq.1} parent=1 // pred_region
      _
    $region25: #{decoder_forward_seq.1} parent=1 // pred_fallthru
      _
    // Predicated region
    $region26: #{decoder_forward_seq.1} parent=1 // pred_check
      _
    $region27: #{decoder_forward_seq.1} parent=1 // pred_check_branch
      %43 = sbr.rel (0) target = $region29
    $region28: #{decoder_forward_seq.1} parent=1 // pred_region
      _
    $region29: #{decoder_forward_seq.1} parent=1 // pred_fallthru
      _
    // Predicated region
    $region30: #{decoder_forward_seq.1} parent=1 // pred_check
      _
    $region31: #{decoder_forward_seq.1} parent=1 // pred_check_branch
      %45 = sbr.rel (0) target = $region33
    $region32: #{decoder_forward_seq.1} parent=1 // pred_region
      %s47 = ssub.s32 256, 256
      %48 = vsyncadd [#allocation6], %s47
      %s49 = sshll.u32 [#allocation5], 4
      %s50 = int_to_ptr.vmem [resolvable:$true] %s49
      %55 = dma.hbm_to_vmem [thread:$0]  %s7, 256, %s50, [#allocation6], 64, 64, 4
    $region33: #{decoder_forward_seq.1} parent=1 // pred_fallthru
      _
    // Predicated region
    $region34: #{decoder_forward_seq.1} parent=1 // pred_check
      _
    $region35: #{decoder_forward_seq.1} parent=1 // pred_check_branch
      %57 = sbr.rel (0) target = $region37
    $region36: #{decoder_forward_seq.1} parent=1 // pred_region
      _
    $region37: #{decoder_forward_seq.1} parent=1 // pred_fallthru
      _
    // Predicated region
    $region38: #{decoder_forward_seq.1} parent=1 // pred_check
      _
    $region39: #{decoder_forward_seq.1} parent=1 // pred_check_branch
      %59 = sbr.rel (0) target = $region41
    $region40: #{decoder_forward_seq.1} parent=1 // pred_region
      %60 = dma.done [#allocation3], 2048
    $region41: #{decoder_forward_seq.1} parent=1 // pred_fallthru
      _
    // Predicated region
    $region42: #{decoder_forward_seq.1} parent=1 // pred_check
      _
    $region43: #{decoder_forward_seq.1} parent=1 // pred_check_branch
      %62 = sbr.rel (0) target = $region45
    $region44: #{decoder_forward_seq.1} parent=1 // pred_region
      %63 = dma.done [#allocation6], 256
    $region45: #{decoder_forward_seq.1} parent=1 // pred_fallthru
      _
    %p65 = scmp.eq.s32.totalorder 0, 0
    // Predicated region
    $region46: #{decoder_forward_seq.1} parent=1 // pred_check
      %p66 = pneg %p65
    $region47: #{decoder_forward_seq.1} parent=1 // pred_check_branch
      %68 = sbr.rel (%p66) target = $region49
    $region48: #{decoder_forward_seq.1} parent=1 // pred_region
      %v69 = vld [vmem:[%s5] sm:$0xff]
      %v70 = vld [vmem:[%s5 + $0x8] sm:$0xff]
      %vm71 = vcmask 261120
      %72 = vst.msk [vmem:[%s10] sm:$0xff] %vm71, %v69
      %73 = vst.msk [vmem:[%s10 + $0x8] sm:$0xff] %vm71, %v70
      %v74 = vld [vmem:[%s6] sm:$0xff]
      %v75 = vld [vmem:[%s6 + $0x8] sm:$0xff]
      %76 = vst.msk [vmem:[%s11] sm:$0xff] %vm71, %v74
      %77 = vst.msk [vmem:[%s11 + $0x8] sm:$0xff] %vm71, %v75
    $region49: #{decoder_forward_seq.1} parent=1 // pred_fallthru
      _
    %v78 = vld [vmem:[%s0] sm:$0xff]
    %v79 = vlaneseq
    %v80 = vand.u32 %v79, 127
    %81 = vset.pattern.permute.xlu0 0
    %82 = vperm.xlu0 %81, %v78
    %v83 = vpop.permute.xlu0 %82
    %vm84 = vcmp.eq.s32.totalorder %v80, %v83
    %v85 = vsel %vm84, 1, 0
    %v86 = vcvt.s32.f32 %v85
    %v87 = vpack.c.bf16 %v86, %v86
    %v88 = vld [vmem:[%s1] sm:$0xf]
    %v89 = vld [vmem:[%s1 + $0x4] sm:$0xf]
    %v90 = vld [vmem:[%s1 + $0x8] sm:$0xf]
    %v91 = vld [vmem:[%s1 + $0xc] sm:$0xf]
    %v92 = vld [vmem:[%s1 + $0x10] sm:$0xf]
    %v93 = vld [vmem:[%s1 + $0x14] sm:$0xf]
    %v94 = vld [vmem:[%s1 + $0x18] sm:$0xf]
    %v95 = vld [vmem:[%s1 + $0x1c] sm:$0xf]
    %v96 = vld [vmem:[%s1 + $0x20] sm:$0xf]
    %v97 = vld [vmem:[%s1 + $0x24] sm:$0xf]
    %v98 = vld [vmem:[%s1 + $0x28] sm:$0xf]
    %v99 = vld [vmem:[%s1 + $0x2c] sm:$0xf]
    %v100 = vld [vmem:[%s1 + $0x30] sm:$0xf]
    %v101 = vld [vmem:[%s1 + $0x34] sm:$0xf]
    %v102 = vld [vmem:[%s1 + $0x38] sm:$0xf]
    %v103 = vld [vmem:[%s1 + $0x3c] sm:$0xf]
    %v120 = vunpack.c.l.b16 %v88
    %v121 = vunpack.c.l.b16 %v89
    %v122 = vunpack.c.l.b16 %v90
    %v123 = vunpack.c.l.b16 %v91
    %v124 = vunpack.c.l.b16 %v92
    %v125 = vunpack.c.l.b16 %v93
    %v126 = vunpack.c.l.b16 %v94
    %v127 = vunpack.c.l.b16 %v95
    %v128 = vunpack.c.l.b16 %v96
    %v129 = vunpack.c.l.b16 %v97
    %v130 = vunpack.c.l.b16 %v98
    %v131 = vunpack.c.l.b16 %v99
    %v132 = vunpack.c.l.b16 %v100
    %v133 = vunpack.c.l.b16 %v101
    %v134 = vunpack.c.l.b16 %v102
    %v135 = vunpack.c.l.b16 %v103
    %v136 = vpack.c.b16 %v121, %v120
    %v137 = vpack.c.b16 %v123, %v122
    %v138 = vpack.c.b16 %v125, %v124
    %v139 = vpack.c.b16 %v127, %v126
    %v140 = vpack.c.b16 %v129, %v128
    %v141 = vpack.c.b16 %v131, %v130
    %v142 = vpack.c.b16 %v133, %v132
    %v143 = vpack.c.b16 %v135, %v134
    %152 = vmatprep.subr.bf16.mxu0 0
    %153 = vmatpush1.bf16.msra.mxu0 %v143
    %154 = vmatprep.subr.bf16.mxu0 0
    %155 = vmatpush1.bf16.msra.mxu0 %v142
    %156 = vmatprep.subr.bf16.mxu0 0
    %157 = vmatpush1.bf16.msra.mxu0 %v141
    %158 = vmatprep.subr.bf16.mxu0 0
    %159 = vmatpush1.bf16.msra.mxu0 %v140
    %160 = vmatprep.subr.bf16.mxu0 0
    %161 = vmatpush1.bf16.msra.mxu0 %v139
    %162 = vmatprep.subr.bf16.mxu0 0
    %163 = vmatpush1.bf16.msra.mxu0 %v138
    %164 = vmatprep.subr.bf16.mxu0 0
    %165 = vmatpush1.bf16.msra.mxu0 %v137
    %166 = vmatprep.subr.bf16.mxu0 0
    %167 = vmatpush1.bf16.msra.mxu0 %v136
    %168 = vmatprep.subr.bf16.mxu0 0
    %169 = vmatpush2.bf16.msra.mxu0 0
    %170 = vmatprep.subr.bf16.mxu0 0
    %171 = vmatpush2.bf16.msra.mxu0 0
    %172 = vmatprep.subr.bf16.mxu0 0
    %173 = vmatpush2.bf16.msra.mxu0 0
    %174 = vmatprep.subr.bf16.mxu0 0
    %175 = vmatpush2.bf16.msra.mxu0 0
    %176 = vmatprep.subr.bf16.mxu0 0
    %177 = vmatpush2.bf16.msra.mxu0 0
    %178 = vmatprep.subr.bf16.mxu0 0
    %179 = vmatpush2.bf16.msra.mxu0 0
    %180 = vmatprep.subr.bf16.mxu0 0
    %181 = vmatpush2.bf16.msra.mxu0 0
    %182 = vmatprep.subr.bf16.mxu0 0
    %183 = vmatpush2.bf16.msra.mxu0 0
    %184 = vmatprep.mubr.bf16.mxu0 0
    %185 = vmatmul.mubr.bf16.gmra.mxu0 %v87
    %v186 = vpop.f32.mrf.mxu0
    %v187 = vadd.f32 0.0, %v186
    %v188 = vpop.f32.mrf.mxu0
    %v189 = vpop.f32.mrf.mxu0
    %v190 = vpop.f32.mrf.mxu0
    %191 = vdwg.mxu0
    %v192 = vld [vmem:[%s10] sm:$0xff]
    %v193 = vld [vmem:[%s11] sm:$0xff]
    %v194 = vpack.c.bf16 %v187, %v187
    %v195 = vpack.c.bf16 %v192, %v192
    %v196 = vld [vmem:[%s2] sm:$0xf]
    %v197 = vld [vmem:[%s2 + $0x4] sm:$0xf]
    %v198 = vld [vmem:[%s2 + $0x8] sm:$0xf]
    %v199 = vld [vmem:[%s2 + $0xc] sm:$0xf]
    %v200 = vld [vmem:[#allocation2] sm:$0xf]
    %v201 = vld [vmem:[#allocation2 + $0x4] sm:$0xf]
    %v202 = vld [vmem:[#allocation2 + $0x8] sm:$0xf]
    %v203 = vld [vmem:[#allocation2 + $0xc] sm:$0xf]
    %v208 = vunpack.c.l.b16 %v200
    %v209 = vunpack.c.l.b16 %v201
    %v210 = vunpack.c.l.b16 %v202
    %v211 = vunpack.c.l.b16 %v203
    %v212 = vpack.c.b16 %v209, %v208
    %v213 = vpack.c.b16 %v211, %v210
    %vm216 = vcmask 261120
    %v218 = vsel %vm216, %v195, 0
    %220 = vmatprep.subr.bf16.mxu0 0
    %221 = vmatpush1.bf16.msra.mxu0 0
    %222 = vmatprep.subr.bf16.mxu0 0
    %223 = vmatpush1.bf16.msra.mxu0 0
    %224 = vmatprep.subr.bf16.mxu0 0
    %225 = vmatpush1.bf16.msra.mxu0 0
    %226 = vmatprep.subr.bf16.mxu0 0
    %227 = vmatpush1.bf16.msra.mxu0 0
    %228 = vmatprep.subr.bf16.mxu0 0
    %229 = vmatpush1.bf16.msra.mxu0 0
    %230 = vmatprep.subr.bf16.mxu0 0
    %231 = vmatpush1.bf16.msra.mxu0 0
    %232 = vmatprep.subr.bf16.mxu0 0
    %233 = vmatpush1.bf16.msra.mxu0 %v213
    %234 = vmatprep.subr.bf16.mxu0 0
    %235 = vmatpush1.bf16.msra.mxu0 %v212
    %236 = vmatprep.subr.bf16.mxu0 0
    %237 = vmatpush2.bf16.msra.mxu0 0
    %238 = vmatprep.subr.bf16.mxu0 0
    %239 = vmatpush2.bf16.msra.mxu0 0
    %240 = vmatprep.subr.bf16.mxu0 0
    %241 = vmatpush2.bf16.msra.mxu0 0
    %242 = vmatprep.subr.bf16.mxu0 0
    %243 = vmatpush2.bf16.msra.mxu0 0
    %244 = vmatprep.subr.bf16.mxu0 0
    %245 = vmatpush2.bf16.msra.mxu0 0
    %246 = vmatprep.subr.bf16.mxu0 0
    %247 = vmatpush2.bf16.msra.mxu0 0
    %248 = vmatprep.subr.bf16.mxu0 0
    %249 = vmatpush2.bf16.msra.mxu0 0
    %250 = vmatprep.subr.bf16.mxu0 0
    %251 = vmatpush2.bf16.msra.mxu0 0
    %252 = vmatprep.mubr.bf16.mxu0 0
    %253 = vmatmul.mubr.bf16.gmra.mxu0 %v218
    %v254 = vpop.f32.mrf.mxu0
    %v255 = vadd.f32 0.0, %v254
    %v256 = vpop.f32.mrf.mxu0
    %v257 = vpop.f32.mrf.mxu0
    %v258 = vpop.f32.mrf.mxu0
    %259 = vdwg.mxu0
    %v264 = vunpack.c.l.b16 %v196
    %v265 = vunpack.c.l.b16 %v197
    %v266 = vunpack.c.l.b16 %v198
    %v267 = vunpack.c.l.b16 %v199
    %v268 = vpack.c.b16 %v265, %v264
    %v269 = vpack.c.b16 %v267, %v266
    %v273 = vsel %vm216, %v194, 0
    %275 = vmatprep.subr.bf16.mxu0 0
    %276 = vmatpush1.bf16.msra.mxu0 0
    %277 = vmatprep.subr.bf16.mxu0 0
    %278 = vmatpush1.bf16.msra.mxu0 0
    %279 = vmatprep.subr.bf16.mxu0 0
    %280 = vmatpush1.bf16.msra.mxu0 0
    %281 = vmatprep.subr.bf16.mxu0 0
    %282 = vmatpush1.bf16.msra.mxu0 0
    %283 = vmatprep.subr.bf16.mxu0 0
    %284 = vmatpush1.bf16.msra.mxu0 0
    %285 = vmatprep.subr.bf16.mxu0 0
    %286 = vmatpush1.bf16.msra.mxu0 0
    %287 = vmatprep.subr.bf16.mxu0 0
    %288 = vmatpush1.bf16.msra.mxu0 %v269
    %289 = vmatprep.subr.bf16.mxu0 0
    %290 = vmatpush1.bf16.msra.mxu0 %v268
    %291 = vmatprep.subr.bf16.mxu0 0
    %292 = vmatpush2.bf16.msra.mxu0 0
    %293 = vmatprep.subr.bf16.mxu0 0
    %294 = vmatpush2.bf16.msra.mxu0 0
    %295 = vmatprep.subr.bf16.mxu0 0
    %296 = vmatpush2.bf16.msra.mxu0 0
    %297 = vmatprep.subr.bf16.mxu0 0
    %298 = vmatpush2.bf16.msra.mxu0 0
    %299 = vmatprep.subr.bf16.mxu0 0
    %300 = vmatpush2.bf16.msra.mxu0 0
    %301 = vmatprep.subr.bf16.mxu0 0
    %302 = vmatpush2.bf16.msra.mxu0 0
    %303 = vmatprep.subr.bf16.mxu0 0
    %304 = vmatpush2.bf16.msra.mxu0 0
    %305 = vmatprep.subr.bf16.mxu0 0
    %306 = vmatpush2.bf16.msra.mxu0 0
    %307 = vmatprep.mubr.bf16.mxu0 0
    %308 = vmatmul.mubr.bf16.gmra.mxu0 %v273
    %v309 = vpop.f32.mrf.mxu0
    %v310 = vadd.f32 %v255, %v309
    %v311 = vpop.f32.mrf.mxu0
    %v312 = vpop.f32.mrf.mxu0
    %v313 = vpop.f32.mrf.mxu0
    %314 = vdwg.mxu0
    %v315 = vld [vmem:[%s4] sm:$0x1]
    %v317 = vlaneseq
    %v318 = vshrl.u32 %v317, 7
    %v319 = vsub.s32 0, %v318
    %v320 = vrot.slane %v315, %v319
    %v322 = vadd.f32 %v310, %v320
    %v323 = vxor.u32 %v322, 2147483648
    %v324 = vmul.f32 %v323, 1.442695
    %v325 = vpow.pop %v324
    %v326 = vadd.f32 %v325, 1.0
    %v327 = vrcp.pop %v326
    %v328 = vmul.f32 1.0, %v327
    %s329 = scalar_lea.vmem %s2, 16
    %v330 = vld [vmem:[%s329] sm:$0xf]
    %v331 = vld [vmem:[%s329 + $0x4] sm:$0xf]
    %v332 = vld [vmem:[%s329 + $0x8] sm:$0xf]
    %v333 = vld [vmem:[%s329 + $0xc] sm:$0xf]
    %s334 = scalar_lea.vmem [#allocation2], 16
    %v335 = vld [vmem:[%s334] sm:$0xf]
    %v336 = vld [vmem:[%s334 + $0x4] sm:$0xf]
    %v337 = vld [vmem:[%s334 + $0x8] sm:$0xf]
    %v338 = vld [vmem:[%s334 + $0xc] sm:$0xf]
    %v343 = vunpack.c.l.b16 %v335
    %v344 = vunpack.c.l.b16 %v336
    %v345 = vunpack.c.l.b16 %v337
    %v346 = vunpack.c.l.b16 %v338
    %v347 = vpack.c.b16 %v344, %v343
    %v348 = vpack.c.b16 %v346, %v345
    %351 = vmatprep.subr.bf16.mxu0 0
    %352 = vmatpush1.bf16.msra.mxu0 0
    %353 = vmatprep.subr.bf16.mxu0 0
    %354 = vmatpush1.bf16.msra.mxu0 0
    %355 = vmatprep.subr.bf16.mxu0 0
    %356 = vmatpush1.bf16.msra.mxu0 0
    %357 = vmatprep.subr.bf16.mxu0 0
    %358 = vmatpush1.bf16.msra.mxu0 0
    %359 = vmatprep.subr.bf16.mxu0 0
    %360 = vmatpush1.bf16.msra.mxu0 0
    %361 = vmatprep.subr.bf16.mxu0 0
    %362 = vmatpush1.bf16.msra.mxu0 0
    %363 = vmatprep.subr.bf16.mxu0 0
    %364 = vmatpush1.bf16.msra.mxu0 %v348
    %365 = vmatprep.subr.bf16.mxu0 0
    %366 = vmatpush1.bf16.msra.mxu0 %v347
    %367 = vmatprep.subr.bf16.mxu0 0
    %368 = vmatpush2.bf16.msra.mxu0 0
    %369 = vmatprep.subr.bf16.mxu0 0
    %370 = vmatpush2.bf16.msra.mxu0 0
    %371 = vmatprep.subr.bf16.mxu0 0
    %372 = vmatpush2.bf16.msra.mxu0 0
    %373 = vmatprep.subr.bf16.mxu0 0
    %374 = vmatpush2.bf16.msra.mxu0 0
    %375 = vmatprep.subr.bf16.mxu0 0
    %376 = vmatpush2.bf16.msra.mxu0 0
    %377 = vmatprep.subr.bf16.mxu0 0
    %378 = vmatpush2.bf16.msra.mxu0 0
    %379 = vmatprep.subr.bf16.mxu0 0
    %380 = vmatpush2.bf16.msra.mxu0 0
    %381 = vmatprep.subr.bf16.mxu0 0
    %382 = vmatpush2.bf16.msra.mxu0 0
    %383 = vmatprep.mubr.bf16.mxu0 0
    %384 = vmatmul.mubr.bf16.gmra.mxu0 %v218
    %v385 = vpop.f32.mrf.mxu0
    %v386 = vadd.f32 0.0, %v385
    %v387 = vpop.f32.mrf.mxu0
    %v388 = vpop.f32.mrf.mxu0
    %v389 = vpop.f32.mrf.mxu0
    %390 = vdwg.mxu0
    %v395 = vunpack.c.l.b16 %v330
    %v396 = vunpack.c.l.b16 %v331
    %v397 = vunpack.c.l.b16 %v332
    %v398 = vunpack.c.l.b16 %v333
    %v399 = vpack.c.b16 %v396, %v395
    %v400 = vpack.c.b16 %v398, %v397
    %403 = vmatprep.subr.bf16.mxu0 0
    %404 = vmatpush1.bf16.msra.mxu0 0
    %405 = vmatprep.subr.bf16.mxu0 0
    %406 = vmatpush1.bf16.msra.mxu0 0
    %407 = vmatprep.subr.bf16.mxu0 0
    %408 = vmatpush1.bf16.msra.mxu0 0
    %409 = vmatprep.subr.bf16.mxu0 0
    %410 = vmatpush1.bf16.msra.mxu0 0
    %411 = vmatprep.subr.bf16.mxu0 0
    %412 = vmatpush1.bf16.msra.mxu0 0
    %413 = vmatprep.subr.bf16.mxu0 0
    %414 = vmatpush1.bf16.msra.mxu0 0
    %415 = vmatprep.subr.bf16.mxu0 0
    %416 = vmatpush1.bf16.msra.mxu0 %v400
    %417 = vmatprep.subr.bf16.mxu0 0
    %418 = vmatpush1.bf16.msra.mxu0 %v399
    %419 = vmatprep.subr.bf16.mxu0 0
    %420 = vmatpush2.bf16.msra.mxu0 0
    %421 = vmatprep.subr.bf16.mxu0 0
    %422 = vmatpush2.bf16.msra.mxu0 0
    %423 = vmatprep.subr.bf16.mxu0 0
    %424 = vmatpush2.bf16.msra.mxu0 0
    %425 = vmatprep.subr.bf16.mxu0 0
    %426 = vmatpush2.bf16.msra.mxu0 0
    %427 = vmatprep.subr.bf16.mxu0 0
    %428 = vmatpush2.bf16.msra.mxu0 0
    %429 = vmatprep.subr.bf16.mxu0 0
    %430 = vmatpush2.bf16.msra.mxu0 0
    %431 = vmatprep.subr.bf16.mxu0 0
    %432 = vmatpush2.bf16.msra.mxu0 0
    %433 = vmatprep.subr.bf16.mxu0 0
    %434 = vmatpush2.bf16.msra.mxu0 0
    %435 = vmatprep.mubr.bf16.mxu0 0
    %436 = vmatmul.mubr.bf16.gmra.mxu0 %v273
    %v437 = vpop.f32.mrf.mxu0
    %v438 = vadd.f32 %v386, %v437
    %v439 = vpop.f32.mrf.mxu0
    %v440 = vpop.f32.mrf.mxu0
    %v441 = vpop.f32.mrf.mxu0
    %442 = vdwg.mxu0
    %s443 = scalar_lea.vmem %s4, 1
    %v444 = vld [vmem:[%s443] sm:$0x1]
    %v446 = vlaneseq
    %v447 = vshrl.u32 %v446, 7
    %v448 = vsub.s32 0, %v447
    %v449 = vrot.slane %v444, %v448
    %v451 = vadd.f32 %v438, %v449
    %v452 = vxor.u32 %v451, 2147483648
    %v453 = vmul.f32 %v452, 1.442695
    %v454 = vpow.pop %v453
    %v455 = vadd.f32 %v454, 1.0
    %v456 = vrcp.pop %v455
    %v457 = vmul.f32 1.0, %v456
    %s458 = scalar_lea.vmem %s2, 32
    %v459 = vld [vmem:[%s458] sm:$0xf]
    %v460 = vld [vmem:[%s458 + $0x4] sm:$0xf]
    %v461 = vld [vmem:[%s458 + $0x8] sm:$0xf]
    %v462 = vld [vmem:[%s458 + $0xc] sm:$0xf]
    %s463 = scalar_lea.vmem [#allocation2], 32
    %v464 = vld [vmem:[%s463] sm:$0xf]
    %v465 = vld [vmem:[%s463 + $0x4] sm:$0xf]
    %v466 = vld [vmem:[%s463 + $0x8] sm:$0xf]
    %v467 = vld [vmem:[%s463 + $0xc] sm:$0xf]
    %v472 = vunpack.c.l.b16 %v464
    %v473 = vunpack.c.l.b16 %v465
    %v474 = vunpack.c.l.b16 %v466
    %v475 = vunpack.c.l.b16 %v467
    %v476 = vpack.c.b16 %v473, %v472
    %v477 = vpack.c.b16 %v475, %v474
    %480 = vmatprep.subr.bf16.mxu0 0
    %481 = vmatpush1.bf16.msra.mxu0 0
    %482 = vmatprep.subr.bf16.mxu0 0
    %483 = vmatpush1.bf16.msra.mxu0 0
    %484 = vmatprep.subr.bf16.mxu0 0
    %485 = vmatpush1.bf16.msra.mxu0 0
    %486 = vmatprep.subr.bf16.mxu0 0
    %487 = vmatpush1.bf16.msra.mxu0 0
    %488 = vmatprep.subr.bf16.mxu0 0
    %489 = vmatpush1.bf16.msra.mxu0 0
    %490 = vmatprep.subr.bf16.mxu0 0
    %491 = vmatpush1.bf16.msra.mxu0 0
    %492 = vmatprep.subr.bf16.mxu0 0
    %493 = vmatpush1.bf16.msra.mxu0 %v477
    %494 = vmatprep.subr.bf16.mxu0 0
    %495 = vmatpush1.bf16.msra.mxu0 %v476
    %496 = vmatprep.subr.bf16.mxu0 0
    %497 = vmatpush2.bf16.msra.mxu0 0
    %498 = vmatprep.subr.bf16.mxu0 0
    %499 = vmatpush2.bf16.msra.mxu0 0
    %500 = vmatprep.subr.bf16.mxu0 0
    %501 = vmatpush2.bf16.msra.mxu0 0
    %502 = vmatprep.subr.bf16.mxu0 0
    %503 = vmatpush2.bf16.msra.mxu0 0
    %504 = vmatprep.subr.bf16.mxu0 0
    %505 = vmatpush2.bf16.msra.mxu0 0
    %506 = vmatprep.subr.bf16.mxu0 0
    %507 = vmatpush2.bf16.msra.mxu0 0
    %508 = vmatprep.subr.bf16.mxu0 0
    %509 = vmatpush2.bf16.msra.mxu0 0
    %510 = vmatprep.subr.bf16.mxu0 0
    %511 = vmatpush2.bf16.msra.mxu0 0
    %512 = vmatprep.mubr.bf16.mxu0 0
    %513 = vmatmul.mubr.bf16.gmra.mxu0 %v218
    %v514 = vpop.f32.mrf.mxu0
    %v515 = vadd.f32 0.0, %v514
    %v516 = vpop.f32.mrf.mxu0
    %v517 = vpop.f32.mrf.mxu0
    %v518 = vpop.f32.mrf.mxu0
    %519 = vdwg.mxu0
    %v524 = vunpack.c.l.b16 %v459
    %v525 = vunpack.c.l.b16 %v460
    %v526 = vunpack.c.l.b16 %v461
    %v527 = vunpack.c.l.b16 %v462
    %v528 = vpack.c.b16 %v525, %v524
    %v529 = vpack.c.b16 %v527, %v526
    %532 = vmatprep.subr.bf16.mxu0 0
    %533 = vmatpush1.bf16.msra.mxu0 0
    %534 = vmatprep.subr.bf16.mxu0 0
    %535 = vmatpush1.bf16.msra.mxu0 0
    %536 = vmatprep.subr.bf16.mxu0 0
    %537 = vmatpush1.bf16.msra.mxu0 0
    %538 = vmatprep.subr.bf16.mxu0 0
    %539 = vmatpush1.bf16.msra.mxu0 0
    %540 = vmatprep.subr.bf16.mxu0 0
    %541 = vmatpush1.bf16.msra.mxu0 0
    %542 = vmatprep.subr.bf16.mxu0 0
    %543 = vmatpush1.bf16.msra.mxu0 0
    %544 = vmatprep.subr.bf16.mxu0 0
    %545 = vmatpush1.bf16.msra.mxu0 %v529
    %546 = vmatprep.subr.bf16.mxu0 0
    %547 = vmatpush1.bf16.msra.mxu0 %v528
    %548 = vmatprep.subr.bf16.mxu0 0
    %549 = vmatpush2.bf16.msra.mxu0 0
    %550 = vmatprep.subr.bf16.mxu0 0
    %551 = vmatpush2.bf16.msra.mxu0 0
    %552 = vmatprep.subr.bf16.mxu0 0
    %553 = vmatpush2.bf16.msra.mxu0 0
    %554 = vmatprep.subr.bf16.mxu0 0
    %555 = vmatpush2.bf16.msra.mxu0 0
    %556 = vmatprep.subr.bf16.mxu0 0
    %557 = vmatpush2.bf16.msra.mxu0 0
    %558 = vmatprep.subr.bf16.mxu0 0
    %559 = vmatpush2.bf16.msra.mxu0 0
    %560 = vmatprep.subr.bf16.mxu0 0
    %561 = vmatpush2.bf16.msra.mxu0 0
    %562 = vmatprep.subr.bf16.mxu0 0
    %563 = vmatpush2.bf16.msra.mxu0 0
    %564 = vmatprep.mubr.bf16.mxu0 0
    %565 = vmatmul.mubr.bf16.gmra.mxu0 %v273
    %v566 = vpop.f32.mrf.mxu0
    %v567 = vadd.f32 %v515, %v566
    %v568 = vpop.f32.mrf.mxu0
    %v569 = vpop.f32.mrf.mxu0
    %v570 = vpop.f32.mrf.mxu0
    %571 = vdwg.mxu0
    %s572 = scalar_lea.vmem %s4, 2
    %v573 = vld [vmem:[%s572] sm:$0x1]
    %v575 = vlaneseq
    %v576 = vshrl.u32 %v575, 7
    %v577 = vsub.s32 0, %v576
    %v578 = vrot.slane %v573, %v577
    %v580 = vadd.f32 %v567, %v578
    %v581 = vtanh.pop %v580
    %s582 = scalar_lea.vmem %s2, 48
    %v583 = vld [vmem:[%s582] sm:$0xf]
    %v584 = vld [vmem:[%s582 + $0x4] sm:$0xf]
    %v585 = vld [vmem:[%s582 + $0x8] sm:$0xf]
    %v586 = vld [vmem:[%s582 + $0xc] sm:$0xf]
    %s587 = scalar_lea.vmem [#allocation2], 48
    %v588 = vld [vmem:[%s587] sm:$0xf]
    %v589 = vld [vmem:[%s587 + $0x4] sm:$0xf]
    %v590 = vld [vmem:[%s587 + $0x8] sm:$0xf]
    %v591 = vld [vmem:[%s587 + $0xc] sm:$0xf]
    %v596 = vunpack.c.l.b16 %v588
    %v597 = vunpack.c.l.b16 %v589
    %v598 = vunpack.c.l.b16 %v590
    %v599 = vunpack.c.l.b16 %v591
    %v600 = vpack.c.b16 %v597, %v596
    %v601 = vpack.c.b16 %v599, %v598
    %604 = vmatprep.subr.bf16.mxu0 0
    %605 = vmatpush1.bf16.msra.mxu0 0
    %606 = vmatprep.subr.bf16.mxu0 0
    %607 = vmatpush1.bf16.msra.mxu0 0
    %608 = vmatprep.subr.bf16.mxu0 0
    %609 = vmatpush1.bf16.msra.mxu0 0
    %610 = vmatprep.subr.bf16.mxu0 0
    %611 = vmatpush1.bf16.msra.mxu0 0
    %612 = vmatprep.subr.bf16.mxu0 0
    %613 = vmatpush1.bf16.msra.mxu0 0
    %614 = vmatprep.subr.bf16.mxu0 0
    %615 = vmatpush1.bf16.msra.mxu0 0
    %616 = vmatprep.subr.bf16.mxu0 0
    %617 = vmatpush1.bf16.msra.mxu0 %v601
    %618 = vmatprep.subr.bf16.mxu0 0
    %619 = vmatpush1.bf16.msra.mxu0 %v600
    %620 = vmatprep.subr.bf16.mxu0 0
    %621 = vmatpush2.bf16.msra.mxu0 0
    %622 = vmatprep.subr.bf16.mxu0 0
    %623 = vmatpush2.bf16.msra.mxu0 0
    %624 = vmatprep.subr.bf16.mxu0 0
    %625 = vmatpush2.bf16.msra.mxu0 0
    %626 = vmatprep.subr.bf16.mxu0 0
    %627 = vmatpush2.bf16.msra.mxu0 0
    %628 = vmatprep.subr.bf16.mxu0 0
    %629 = vmatpush2.bf16.msra.mxu0 0
    %630 = vmatprep.subr.bf16.mxu0 0
    %631 = vmatpush2.bf16.msra.mxu0 0
    %632 = vmatprep.subr.bf16.mxu0 0
    %633 = vmatpush2.bf16.msra.mxu0 0
    %634 = vmatprep.subr.bf16.mxu0 0
    %635 = vmatpush2.bf16.msra.mxu0 0
    %636 = vmatprep.mubr.bf16.mxu0 0
    %637 = vmatmul.mubr.bf16.gmra.mxu0 %v218
    %v638 = vpop.f32.mrf.mxu0
    %v639 = vadd.f32 0.0, %v638
    %v640 = vpop.f32.mrf.mxu0
    %v641 = vpop.f32.mrf.mxu0
    %v642 = vpop.f32.mrf.mxu0
    %643 = vdwg.mxu0
    %v648 = vunpack.c.l.b16 %v583
    %v649 = vunpack.c.l.b16 %v584
    %v650 = vunpack.c.l.b16 %v585
    %v651 = vunpack.c.l.b16 %v586
    %v652 = vpack.c.b16 %v649, %v648
    %v653 = vpack.c.b16 %v651, %v650
    %656 = vmatprep.subr.bf16.mxu0 0
    %657 = vmatpush1.bf16.msra.mxu0 0
    %658 = vmatprep.subr.bf16.mxu0 0
    %659 = vmatpush1.bf16.msra.mxu0 0
    %660 = vmatprep.subr.bf16.mxu0 0
    %661 = vmatpush1.bf16.msra.mxu0 0
    %662 = vmatprep.subr.bf16.mxu0 0
    %663 = vmatpush1.bf16.msra.mxu0 0
    %664 = vmatprep.subr.bf16.mxu0 0
    %665 = vmatpush1.bf16.msra.mxu0 0
    %666 = vmatprep.subr.bf16.mxu0 0
    %667 = vmatpush1.bf16.msra.mxu0 0
    %668 = vmatprep.subr.bf16.mxu0 0
    %669 = vmatpush1.bf16.msra.mxu0 %v653
    %670 = vmatprep.subr.bf16.mxu0 0
    %671 = vmatpush1.bf16.msra.mxu0 %v652
    %672 = vmatprep.subr.bf16.mxu0 0
    %673 = vmatpush2.bf16.msra.mxu0 0
    %674 = vmatprep.subr.bf16.mxu0 0
    %675 = vmatpush2.bf16.msra.mxu0 0
    %676 = vmatprep.subr.bf16.mxu0 0
    %677 = vmatpush2.bf16.msra.mxu0 0
    %678 = vmatprep.subr.bf16.mxu0 0
    %679 = vmatpush2.bf16.msra.mxu0 0
    %680 = vmatprep.subr.bf16.mxu0 0
    %681 = vmatpush2.bf16.msra.mxu0 0
    %682 = vmatprep.subr.bf16.mxu0 0
    %683 = vmatpush2.bf16.msra.mxu0 0
    %684 = vmatprep.subr.bf16.mxu0 0
    %685 = vmatpush2.bf16.msra.mxu0 0
    %686 = vmatprep.subr.bf16.mxu0 0
    %687 = vmatpush2.bf16.msra.mxu0 0
    %688 = vmatprep.mubr.bf16.mxu0 0
    %689 = vmatmul.mubr.bf16.gmra.mxu0 %v273
    %v690 = vpop.f32.mrf.mxu0
    %v691 = vadd.f32 %v639, %v690
    %v692 = vpop.f32.mrf.mxu0
    %v693 = vpop.f32.mrf.mxu0
    %v694 = vpop.f32.mrf.mxu0
    %695 = vdwg.mxu0
    %s696 = scalar_lea.vmem %s4, 3
    %v697 = vld [vmem:[%s696] sm:$0x1]
    %v699 = vlaneseq
    %v700 = vshrl.u32 %v699, 7
    %v701 = vsub.s32 0, %v700
    %v702 = vrot.slane %v697, %v701
    %v704 = vadd.f32 %v691, %v702
    %v705 = vxor.u32 %v704, 2147483648
    %v706 = vmul.f32 %v705, 1.442695
    %v707 = vpow.pop %v706
    %v708 = vadd.f32 %v707, 1.0
    %v709 = vrcp.pop %v708
    %v710 = vmul.f32 1.0, %v709
    %v711 = vmul.f32 %v457, %v193
    %v712 = vmul.f32 %v328, %v581
    %v713 = vadd.f32 %v711, %v712
    %v714 = vtanh.pop %v713
    %v715 = vmul.f32 %v710, %v714
    %716 = vst.msk [vmem:[%s10] sm:$0xff] %vm216, %v715
    %717 = vst.msk [vmem:[%s11] sm:$0xff] %vm216, %v713
    %s718 = scalar_lea.vmem %s10, 8
    %v719 = vld [vmem:[%s718] sm:$0xff]
    %s720 = scalar_lea.vmem %s11, 8
    %v721 = vld [vmem:[%s720] sm:$0xff]
    %v722 = vpack.c.bf16 %v715, %v715
    %v723 = vpack.c.bf16 %v719, %v719
    %s724 = scalar_lea.vmem %s2, 64
    %v725 = vld [vmem:[%s724] sm:$0xf]
    %v726 = vld [vmem:[%s724 + $0x4] sm:$0xf]
    %v727 = vld [vmem:[%s724 + $0x8] sm:$0xf]
    %v728 = vld [vmem:[%s724 + $0xc] sm:$0xf]
    %s729 = scalar_lea.vmem [#allocation2], 64
    %v730 = vld [vmem:[%s729] sm:$0xf]
    %v731 = vld [vmem:[%s729 + $0x4] sm:$0xf]
    %v732 = vld [vmem:[%s729 + $0x8] sm:$0xf]
    %v733 = vld [vmem:[%s729 + $0xc] sm:$0xf]
    %v738 = vunpack.c.l.b16 %v730
    %v739 = vunpack.c.l.b16 %v731
    %v740 = vunpack.c.l.b16 %v732
    %v741 = vunpack.c.l.b16 %v733
    %v742 = vpack.c.b16 %v739, %v738
    %v743 = vpack.c.b16 %v741, %v740
    %v747 = vsel %vm216, %v723, 0
    %749 = vmatprep.subr.bf16.mxu0 0
    %750 = vmatpush1.bf16.msra.mxu0 0
    %751 = vmatprep.subr.bf16.mxu0 0
    %752 = vmatpush1.bf16.msra.mxu0 0
    %753 = vmatprep.subr.bf16.mxu0 0
    %754 = vmatpush1.bf16.msra.mxu0 0
    %755 = vmatprep.subr.bf16.mxu0 0
    %756 = vmatpush1.bf16.msra.mxu0 0
    %757 = vmatprep.subr.bf16.mxu0 0
    %758 = vmatpush1.bf16.msra.mxu0 0
    %759 = vmatprep.subr.bf16.mxu0 0
    %760 = vmatpush1.bf16.msra.mxu0 0
    %761 = vmatprep.subr.bf16.mxu0 0
    %762 = vmatpush1.bf16.msra.mxu0 %v743
    %763 = vmatprep.subr.bf16.mxu0 0
    %764 = vmatpush1.bf16.msra.mxu0 %v742
    %765 = vmatprep.subr.bf16.mxu0 0
    %766 = vmatpush2.bf16.msra.mxu0 0
    %767 = vmatprep.subr.bf16.mxu0 0
    %768 = vmatpush2.bf16.msra.mxu0 0
    %769 = vmatprep.subr.bf16.mxu0 0
    %770 = vmatpush2.bf16.msra.mxu0 0
    %771 = vmatprep.subr.bf16.mxu0 0
    %772 = vmatpush2.bf16.msra.mxu0 0
    %773 = vmatprep.subr.bf16.mxu0 0
    %774 = vmatpush2.bf16.msra.mxu0 0
    %775 = vmatprep.subr.bf16.mxu0 0
    %776 = vmatpush2.bf16.msra.mxu0 0
    %777 = vmatprep.subr.bf16.mxu0 0
    %778 = vmatpush2.bf16.msra.mxu0 0
    %779 = vmatprep.subr.bf16.mxu0 0
    %780 = vmatpush2.bf16.msra.mxu0 0
    %781 = vmatprep.mubr.bf16.mxu0 0
    %782 = vmatmul.mubr.bf16.gmra.mxu0 %v747
    %v783 = vpop.f32.mrf.mxu0
    %v784 = vadd.f32 0.0, %v783
    %v785 = vpop.f32.mrf.mxu0
    %v786 = vpop.f32.mrf.mxu0
    %v787 = vpop.f32.mrf.mxu0
    %788 = vdwg.mxu0
    %v793 = vunpack.c.l.b16 %v725
    %v794 = vunpack.c.l.b16 %v726
    %v795 = vunpack.c.l.b16 %v727
    %v796 = vunpack.c.l.b16 %v728
    %v797 = vpack.c.b16 %v794, %v793
    %v798 = vpack.c.b16 %v796, %v795
    %v802 = vsel %vm216, %v722, 0
    %804 = vmatprep.subr.bf16.mxu0 0
    %805 = vmatpush1.bf16.msra.mxu0 0
    %806 = vmatprep.subr.bf16.mxu0 0
    %807 = vmatpush1.bf16.msra.mxu0 0
    %808 = vmatprep.subr.bf16.mxu0 0
    %809 = vmatpush1.bf16.msra.mxu0 0
    %810 = vmatprep.subr.bf16.mxu0 0
    %811 = vmatpush1.bf16.msra.mxu0 0
    %812 = vmatprep.subr.bf16.mxu0 0
    %813 = vmatpush1.bf16.msra.mxu0 0
    %814 = vmatprep.subr.bf16.mxu0 0
    %815 = vmatpush1.bf16.msra.mxu0 0
    %816 = vmatprep.subr.bf16.mxu0 0
    %817 = vmatpush1.bf16.msra.mxu0 %v798
    %818 = vmatprep.subr.bf16.mxu0 0
    %819 = vmatpush1.bf16.msra.mxu0 %v797
    %820 = vmatprep.subr.bf16.mxu0 0
    %821 = vmatpush2.bf16.msra.mxu0 0
    %822 = vmatprep.subr.bf16.mxu0 0
    %823 = vmatpush2.bf16.msra.mxu0 0
    %824 = vmatprep.subr.bf16.mxu0 0
    %825 = vmatpush2.bf16.msra.mxu0 0
    %826 = vmatprep.subr.bf16.mxu0 0
    %827 = vmatpush2.bf16.msra.mxu0 0
    %828 = vmatprep.subr.bf16.mxu0 0
    %829 = vmatpush2.bf16.msra.mxu0 0
    %830 = vmatprep.subr.bf16.mxu0 0
    %831 = vmatpush2.bf16.msra.mxu0 0
    %832 = vmatprep.subr.bf16.mxu0 0
    %833 = vmatpush2.bf16.msra.mxu0 0
    %834 = vmatprep.subr.bf16.mxu0 0
    %835 = vmatpush2.bf16.msra.mxu0 0
    %836 = vmatprep.mubr.bf16.mxu0 0
    %837 = vmatmul.mubr.bf16.gmra.mxu0 %v802
    %v838 = vpop.f32.mrf.mxu0
    %v839 = vadd.f32 %v784, %v838
    %v840 = vpop.f32.mrf.mxu0
    %v841 = vpop.f32.mrf.mxu0
    %v842 = vpop.f32.mrf.mxu0
    %843 = vdwg.mxu0
    %s844 = scalar_lea.vmem %s4, 4
    %v845 = vld [vmem:[%s844] sm:$0x1]
    %v847 = vlaneseq
    %v848 = vshrl.u32 %v847, 7
    %v849 = vsub.s32 0, %v848
    %v850 = vrot.slane %v845, %v849
    %v852 = vadd.f32 %v839, %v850
    %v853 = vxor.u32 %v852, 2147483648
    %v854 = vmul.f32 %v853, 1.442695
    %v855 = vpow.pop %v854
    %v856 = vadd.f32 %v855, 1.0
    %v857 = vrcp.pop %v856
    %v858 = vmul.f32 1.0, %v857
    %s859 = scalar_lea.vmem %s2, 80
    %v860 = vld [vmem:[%s859] sm:$0xf]
    %v861 = vld [vmem:[%s859 + $0x4] sm:$0xf]
    %v862 = vld [vmem:[%s859 + $0x8] sm:$0xf]
    %v863 = vld [vmem:[%s859 + $0xc] sm:$0xf]
    %s864 = scalar_lea.vmem [#allocation2], 80
    %v865 = vld [vmem:[%s864] sm:$0xf]
    %v866 = vld [vmem:[%s864 + $0x4] sm:$0xf]
    %v867 = vld [vmem:[%s864 + $0x8] sm:$0xf]
    %v868 = vld [vmem:[%s864 + $0xc] sm:$0xf]
    %v873 = vunpack.c.l.b16 %v865
    %v874 = vunpack.c.l.b16 %v866
    %v875 = vunpack.c.l.b16 %v867
    %v876 = vunpack.c.l.b16 %v868
    %v877 = vpack.c.b16 %v874, %v873
    %v878 = vpack.c.b16 %v876, %v875
    %881 = vmatprep.subr.bf16.mxu0 0
    %882 = vmatpush1.bf16.msra.mxu0 0
    %883 = vmatprep.subr.bf16.mxu0 0
    %884 = vmatpush1.bf16.msra.mxu0 0
    %885 = vmatprep.subr.bf16.mxu0 0
    %886 = vmatpush1.bf16.msra.mxu0 0
    %887 = vmatprep.subr.bf16.mxu0 0
    %888 = vmatpush1.bf16.msra.mxu0 0
    %889 = vmatprep.subr.bf16.mxu0 0
    %890 = vmatpush1.bf16.msra.mxu0 0
    %891 = vmatprep.subr.bf16.mxu0 0
    %892 = vmatpush1.bf16.msra.mxu0 0
    %893 = vmatprep.subr.bf16.mxu0 0
    %894 = vmatpush1.bf16.msra.mxu0 %v878
    %895 = vmatprep.subr.bf16.mxu0 0
    %896 = vmatpush1.bf16.msra.mxu0 %v877
    %897 = vmatprep.subr.bf16.mxu0 0
    %898 = vmatpush2.bf16.msra.mxu0 0
    %899 = vmatprep.subr.bf16.mxu0 0
    %900 = vmatpush2.bf16.msra.mxu0 0
    %901 = vmatprep.subr.bf16.mxu0 0
    %902 = vmatpush2.bf16.msra.mxu0 0
    %903 = vmatprep.subr.bf16.mxu0 0
    %904 = vmatpush2.bf16.msra.mxu0 0
    %905 = vmatprep.subr.bf16.mxu0 0
    %906 = vmatpush2.bf16.msra.mxu0 0
    %907 = vmatprep.subr.bf16.mxu0 0
    %908 = vmatpush2.bf16.msra.mxu0 0
    %909 = vmatprep.subr.bf16.mxu0 0
    %910 = vmatpush2.bf16.msra.mxu0 0
    %911 = vmatprep.subr.bf16.mxu0 0
    %912 = vmatpush2.bf16.msra.mxu0 0
    %913 = vmatprep.mubr.bf16.mxu0 0
    %914 = vmatmul.mubr.bf16.gmra.mxu0 %v747
    %v915 = vpop.f32.mrf.mxu0
    %v916 = vadd.f32 0.0, %v915
    %v917 = vpop.f32.mrf.mxu0
    %v918 = vpop.f32.mrf.mxu0
    %v919 = vpop.f32.mrf.mxu0
    %920 = vdwg.mxu0
    %v925 = vunpack.c.l.b16 %v860
    %v926 = vunpack.c.l.b16 %v861
    %v927 = vunpack.c.l.b16 %v862
    %v928 = vunpack.c.l.b16 %v863
    %v929 = vpack.c.b16 %v926, %v925
    %v930 = vpack.c.b16 %v928, %v927
    %933 = vmatprep.subr.bf16.mxu0 0
    %934 = vmatpush1.bf16.msra.mxu0 0
    %935 = vmatprep.subr.bf16.mxu0 0
    %936 = vmatpush1.bf16.msra.mxu0 0
    %937 = vmatprep.subr.bf16.mxu0 0
    %938 = vmatpush1.bf16.msra.mxu0 0
    %939 = vmatprep.subr.bf16.mxu0 0
    %940 = vmatpush1.bf16.msra.mxu0 0
    %941 = vmatprep.subr.bf16.mxu0 0
    %942 = vmatpush1.bf16.msra.mxu0 0
    %943 = vmatprep.subr.bf16.mxu0 0
    %944 = vmatpush1.bf16.msra.mxu0 0
    %945 = vmatprep.subr.bf16.mxu0 0
    %946 = vmatpush1.bf16.msra.mxu0 %v930
    %947 = vmatprep.subr.bf16.mxu0 0
    %948 = vmatpush1.bf16.msra.mxu0 %v929
    %949 = vmatprep.subr.bf16.mxu0 0
    %950 = vmatpush2.bf16.msra.mxu0 0
    %951 = vmatprep.subr.bf16.mxu0 0
    %952 = vmatpush2.bf16.msra.mxu0 0
    %953 = vmatprep.subr.bf16.mxu0 0
    %954 = vmatpush2.bf16.msra.mxu0 0
    %955 = vmatprep.subr.bf16.mxu0 0
    %956 = vmatpush2.bf16.msra.mxu0 0
    %957 = vmatprep.subr.bf16.mxu0 0
    %958 = vmatpush2.bf16.msra.mxu0 0
    %959 = vmatprep.subr.bf16.mxu0 0
    %960 = vmatpush2.bf16.msra.mxu0 0
    %961 = vmatprep.subr.bf16.mxu0 0
    %962 = vmatpush2.bf16.msra.mxu0 0
    %963 = vmatprep.subr.bf16.mxu0 0
    %964 = vmatpush2.bf16.msra.mxu0 0
    %965 = vmatprep.mubr.bf16.mxu0 0
    %966 = vmatmul.mubr.bf16.gmra.mxu0 %v802
    %v967 = vpop.f32.mrf.mxu0
    %v968 = vadd.f32 %v916, %v967
    %v969 = vpop.f32.mrf.mxu0
    %v970 = vpop.f32.mrf.mxu0
    %v971 = vpop.f32.mrf.mxu0
    %972 = vdwg.mxu0
    %s973 = scalar_lea.vmem %s4, 5
    %v974 = vld [vmem:[%s973] sm:$0x1]
    %v976 = vlaneseq
    %v977 = vshrl.u32 %v976, 7
    %v978 = vsub.s32 0, %v977
    %v979 = vrot.slane %v974, %v978
    %v981 = vadd.f32 %v968, %v979
    %v982 = vxor.u32 %v981, 2147483648
    %v983 = vmul.f32 %v982, 1.442695
    %v984 = vpow.pop %v983
    %v985 = vadd.f32 %v984, 1.0
    %v986 = vrcp.pop %v985
    %v987 = vmul.f32 1.0, %v986
    %s988 = scalar_lea.vmem %s2, 96
    %v989 = vld [vmem:[%s988] sm:$0xf]
    %v990 = vld [vmem:[%s988 + $0x4] sm:$0xf]
    %v991 = vld [vmem:[%s988 + $0x8] sm:$0xf]
    %v992 = vld [vmem:[%s988 + $0xc] sm:$0xf]
    %s993 = scalar_lea.vmem [#allocation2], 96
    %v994 = vld [vmem:[%s993] sm:$0xf]
    %v995 = vld [vmem:[%s993 + $0x4] sm:$0xf]
    %v996 = vld [vmem:[%s993 + $0x8] sm:$0xf]
    %v997 = vld [vmem:[%s993 + $0xc] sm:$0xf]
    %v1002 = vunpack.c.l.b16 %v994
    %v1003 = vunpack.c.l.b16 %v995
    %v1004 = vunpack.c.l.b16 %v996
    %v1005 = vunpack.c.l.b16 %v997
    %v1006 = vpack.c.b16 %v1003, %v1002
    %v1007 = vpack.c.b16 %v1005, %v1004
    %1010 = vmatprep.subr.bf16.mxu0 0
    %1011 = vmatpush1.bf16.msra.mxu0 0
    %1012 = vmatprep.subr.bf16.mxu0 0
    %1013 = vmatpush1.bf16.msra.mxu0 0
    %1014 = vmatprep.subr.bf16.mxu0 0
    %1015 = vmatpush1.bf16.msra.mxu0 0
    %1016 = vmatprep.subr.bf16.mxu0 0
    %1017 = vmatpush1.bf16.msra.mxu0 0
    %1018 = vmatprep.subr.bf16.mxu0 0
    %1019 = vmatpush1.bf16.msra.mxu0 0
    %1020 = vmatprep.subr.bf16.mxu0 0
    %1021 = vmatpush1.bf16.msra.mxu0 0
    %1022 = vmatprep.subr.bf16.mxu0 0
    %1023 = vmatpush1.bf16.msra.mxu0 %v1007
    %1024 = vmatprep.subr.bf16.mxu0 0
    %1025 = vmatpush1.bf16.msra.mxu0 %v1006
    %1026 = vmatprep.subr.bf16.mxu0 0
    %1027 = vmatpush2.bf16.msra.mxu0 0
    %1028 = vmatprep.subr.bf16.mxu0 0
    %1029 = vmatpush2.bf16.msra.mxu0 0
    %1030 = vmatprep.subr.bf16.mxu0 0
    %1031 = vmatpush2.bf16.msra.mxu0 0
    %1032 = vmatprep.subr.bf16.mxu0 0
    %1033 = vmatpush2.bf16.msra.mxu0 0
    %1034 = vmatprep.subr.bf16.mxu0 0
    %1035 = vmatpush2.bf16.msra.mxu0 0
    %1036 = vmatprep.subr.bf16.mxu0 0
    %1037 = vmatpush2.bf16.msra.mxu0 0
    %1038 = vmatprep.subr.bf16.mxu0 0
    %1039 = vmatpush2.bf16.msra.mxu0 0
    %1040 = vmatprep.subr.bf16.mxu0 0
    %1041 = vmatpush2.bf16.msra.mxu0 0
    %1042 = vmatprep.mubr.bf16.mxu0 0
    %1043 = vmatmul.mubr.bf16.gmra.mxu0 %v747
    %v1044 = vpop.f32.mrf.mxu0
    %v1045 = vadd.f32 0.0, %v1044
    %v1046 = vpop.f32.mrf.mxu0
    %v1047 = vpop.f32.mrf.mxu0
    %v1048 = vpop.f32.mrf.mxu0
    %1049 = vdwg.mxu0
    %v1054 = vunpack.c.l.b16 %v989
    %v1055 = vunpack.c.l.b16 %v990
    %v1056 = vunpack.c.l.b16 %v991
    %v1057 = vunpack.c.l.b16 %v992
    %v1058 = vpack.c.b16 %v1055, %v1054
    %v1059 = vpack.c.b16 %v1057, %v1056
    %1062 = vmatprep.subr.bf16.mxu0 0
    %1063 = vmatpush1.bf16.msra.mxu0 0
    %1064 = vmatprep.subr.bf16.mxu0 0
    %1065 = vmatpush1.bf16.msra.mxu0 0
    %1066 = vmatprep.subr.bf16.mxu0 0
    %1067 = vmatpush1.bf16.msra.mxu0 0
    %1068 = vmatprep.subr.bf16.mxu0 0
    %1069 = vmatpush1.bf16.msra.mxu0 0
    %1070 = vmatprep.subr.bf16.mxu0 0
    %1071 = vmatpush1.bf16.msra.mxu0 0
    %1072 = vmatprep.subr.bf16.mxu0 0
    %1073 = vmatpush1.bf16.msra.mxu0 0
    %1074 = vmatprep.subr.bf16.mxu0 0
    %1075 = vmatpush1.bf16.msra.mxu0 %v1059
    %1076 = vmatprep.subr.bf16.mxu0 0
    %1077 = vmatpush1.bf16.msra.mxu0 %v1058
    %1078 = vmatprep.subr.bf16.mxu0 0
    %1079 = vmatpush2.bf16.msra.mxu0 0
    %1080 = vmatprep.subr.bf16.mxu0 0
    %1081 = vmatpush2.bf16.msra.mxu0 0
    %1082 = vmatprep.subr.bf16.mxu0 0
    %1083 = vmatpush2.bf16.msra.mxu0 0
    %1084 = vmatprep.subr.bf16.mxu0 0
    %1085 = vmatpush2.bf16.msra.mxu0 0
    %1086 = vmatprep.subr.bf16.mxu0 0
    %1087 = vmatpush2.bf16.msra.mxu0 0
    %1088 = vmatprep.subr.bf16.mxu0 0
    %1089 = vmatpush2.bf16.msra.mxu0 0
    %1090 = vmatprep.subr.bf16.mxu0 0
    %1091 = vmatpush2.bf16.msra.mxu0 0
    %1092 = vmatprep.subr.bf16.mxu0 0
    %1093 = vmatpush2.bf16.msra.mxu0 0
    %1094 = vmatprep.mubr.bf16.mxu0 0
    %1095 = vmatmul.mubr.bf16.gmra.mxu0 %v802
    %v1096 = vpop.f32.mrf.mxu0
    %v1097 = vadd.f32 %v1045, %v1096
    %v1098 = vpop.f32.mrf.mxu0
    %v1099 = vpop.f32.mrf.mxu0
    %v1100 = vpop.f32.mrf.mxu0
    %1101 = vdwg.mxu0
    %s1102 = scalar_lea.vmem %s4, 6
    %v1103 = vld [vmem:[%s1102] sm:$0x1]
    %v1105 = vlaneseq
    %v1106 = vshrl.u32 %v1105, 7
    %v1107 = vsub.s32 0, %v1106
    %v1108 = vrot.slane %v1103, %v1107
    %v1110 = vadd.f32 %v1097, %v1108
    %v1111 = vtanh.pop %v1110
    %s1112 = scalar_lea.vmem %s2, 112
    %v1113 = vld [vmem:[%s1112] sm:$0xf]
    %v1114 = vld [vmem:[%s1112 + $0x4] sm:$0xf]
    %v1115 = vld [vmem:[%s1112 + $0x8] sm:$0xf]
    %v1116 = vld [vmem:[%s1112 + $0xc] sm:$0xf]
    %s1117 = scalar_lea.vmem [#allocation2], 112
    %v1118 = vld [vmem:[%s1117] sm:$0xf]
    %v1119 = vld [vmem:[%s1117 + $0x4] sm:$0xf]
    %v1120 = vld [vmem:[%s1117 + $0x8] sm:$0xf]
    %v1121 = vld [vmem:[%s1117 + $0xc] sm:$0xf]
    %v1126 = vunpack.c.l.b16 %v1118
    %v1127 = vunpack.c.l.b16 %v1119
    %v1128 = vunpack.c.l.b16 %v1120
    %v1129 = vunpack.c.l.b16 %v1121
    %v1130 = vpack.c.b16 %v1127, %v1126
    %v1131 = vpack.c.b16 %v1129, %v1128
    %1134 = vmatprep.subr.bf16.mxu0 0
    %1135 = vmatpush1.bf16.msra.mxu0 0
    %1136 = vmatprep.subr.bf16.mxu0 0
    %1137 = vmatpush1.bf16.msra.mxu0 0
    %1138 = vmatprep.subr.bf16.mxu0 0
    %1139 = vmatpush1.bf16.msra.mxu0 0
    %1140 = vmatprep.subr.bf16.mxu0 0
    %1141 = vmatpush1.bf16.msra.mxu0 0
    %1142 = vmatprep.subr.bf16.mxu0 0
    %1143 = vmatpush1.bf16.msra.mxu0 0
    %1144 = vmatprep.subr.bf16.mxu0 0
    %1145 = vmatpush1.bf16.msra.mxu0 0
    %1146 = vmatprep.subr.bf16.mxu0 0
    %1147 = vmatpush1.bf16.msra.mxu0 %v1131
    %1148 = vmatprep.subr.bf16.mxu0 0
    %1149 = vmatpush1.bf16.msra.mxu0 %v1130
    %1150 = vmatprep.subr.bf16.mxu0 0
    %1151 = vmatpush2.bf16.msra.mxu0 0
    %1152 = vmatprep.subr.bf16.mxu0 0
    %1153 = vmatpush2.bf16.msra.mxu0 0
    %1154 = vmatprep.subr.bf16.mxu0 0
    %1155 = vmatpush2.bf16.msra.mxu0 0
    %1156 = vmatprep.subr.bf16.mxu0 0
    %1157 = vmatpush2.bf16.msra.mxu0 0
    %1158 = vmatprep.subr.bf16.mxu0 0
    %1159 = vmatpush2.bf16.msra.mxu0 0
    %1160 = vmatprep.subr.bf16.mxu0 0
    %1161 = vmatpush2.bf16.msra.mxu0 0
    %1162 = vmatprep.subr.bf16.mxu0 0
    %1163 = vmatpush2.bf16.msra.mxu0 0
    %1164 = vmatprep.subr.bf16.mxu0 0
    %1165 = vmatpush2.bf16.msra.mxu0 0
    %1166 = vmatprep.mubr.bf16.mxu0 0
    %1167 = vmatmul.mubr.bf16.gmra.mxu0 %v747
    %v1168 = vpop.f32.mrf.mxu0
    %v1169 = vadd.f32 0.0, %v1168
    %v1170 = vpop.f32.mrf.mxu0
    %v1171 = vpop.f32.mrf.mxu0
    %v1172 = vpop.f32.mrf.mxu0
    %1173 = vdwg.mxu0
    %v1178 = vunpack.c.l.b16 %v1113
    %v1179 = vunpack.c.l.b16 %v1114
    %v1180 = vunpack.c.l.b16 %v1115
    %v1181 = vunpack.c.l.b16 %v1116
    %v1182 = vpack.c.b16 %v1179, %v1178
    %v1183 = vpack.c.b16 %v1181, %v1180
    %1186 = vmatprep.subr.bf16.mxu0 0
    %1187 = vmatpush1.bf16.msra.mxu0 0
    %1188 = vmatprep.subr.bf16.mxu0 0
    %1189 = vmatpush1.bf16.msra.mxu0 0
    %1190 = vmatprep.subr.bf16.mxu0 0
    %1191 = vmatpush1.bf16.msra.mxu0 0
    %1192 = vmatprep.subr.bf16.mxu0 0
    %1193 = vmatpush1.bf16.msra.mxu0 0
    %1194 = vmatprep.subr.bf16.mxu0 0
    %1195 = vmatpush1.bf16.msra.mxu0 0
    %1196 = vmatprep.subr.bf16.mxu0 0
    %1197 = vmatpush1.bf16.msra.mxu0 0
    %1198 = vmatprep.subr.bf16.mxu0 0
    %1199 = vmatpush1.bf16.msra.mxu0 %v1183
    %1200 = vmatprep.subr.bf16.mxu0 0
    %1201 = vmatpush1.bf16.msra.mxu0 %v1182
    %1202 = vmatprep.subr.bf16.mxu0 0
    %1203 = vmatpush2.bf16.msra.mxu0 0
    %1204 = vmatprep.subr.bf16.mxu0 0
    %1205 = vmatpush2.bf16.msra.mxu0 0
    %1206 = vmatprep.subr.bf16.mxu0 0
    %1207 = vmatpush2.bf16.msra.mxu0 0
    %1208 = vmatprep.subr.bf16.mxu0 0
    %1209 = vmatpush2.bf16.msra.mxu0 0
    %1210 = vmatprep.subr.bf16.mxu0 0
    %1211 = vmatpush2.bf16.msra.mxu0 0
    %1212 = vmatprep.subr.bf16.mxu0 0
    %1213 = vmatpush2.bf16.msra.mxu0 0
    %1214 = vmatprep.subr.bf16.mxu0 0
    %1215 = vmatpush2.bf16.msra.mxu0 0
    %1216 = vmatprep.subr.bf16.mxu0 0
    %1217 = vmatpush2.bf16.msra.mxu0 0
    %1218 = vmatprep.mubr.bf16.mxu0 0
    %1219 = vmatmul.mubr.bf16.gmra.mxu0 %v802
    %v1220 = vpop.f32.mrf.mxu0
    %v1221 = vadd.f32 %v1169, %v1220
    %v1222 = vpop.f32.mrf.mxu0
    %v1223 = vpop.f32.mrf.mxu0
    %v1224 = vpop.f32.mrf.mxu0
    %1225 = vdwg.mxu0
    %s1226 = scalar_lea.vmem %s4, 7
    %v1227 = vld [vmem:[%s1226] sm:$0x1]
    %v1229 = vlaneseq
    %v1230 = vshrl.u32 %v1229, 7
    %v1231 = vsub.s32 0, %v1230
    %v1232 = vrot.slane %v1227, %v1231
    %v1234 = vadd.f32 %v1221, %v1232
    %v1235 = vxor.u32 %v1234, 2147483648
    %v1236 = vmul.f32 %v1235, 1.442695
    %v1237 = vpow.pop %v1236
    %v1238 = vadd.f32 %v1237, 1.0
    %v1239 = vrcp.pop %v1238
    %v1240 = vmul.f32 1.0, %v1239
    %v1241 = vmul.f32 %v987, %v721
    %v1242 = vmul.f32 %v858, %v1111
    %v1243 = vadd.f32 %v1241, %v1242
    %v1244 = vtanh.pop %v1243
    %v1245 = vmul.f32 %v1240, %v1244
    %1246 = vst.msk [vmem:[%s718] sm:$0xff] %vm216, %v1245
    %1247 = vst.msk [vmem:[%s720] sm:$0xff] %vm216, %v1243
    %v1248 = vpack.c.bf16 %v1245, %v1245
    %v1249 = vld [vmem:[#allocation5] sm:$0xf]
    %v1250 = vld [vmem:[#allocation5 + $0x4] sm:$0xf]
    %v1251 = vld [vmem:[#allocation5 + $0x8] sm:$0xf]
    %v1252 = vld [vmem:[#allocation5 + $0xc] sm:$0xf]
    %v1253 = vld [vmem:[%s8] sm:$0x1]
    %v1255 = vlaneseq
    %v1256 = vshrl.u32 %v1255, 7
    %v1257 = vsub.s32 0, %v1256
    %v1258 = vrot.slane %v1253, %v1257
    %v1264 = vunpack.c.l.b16 %v1249
    %v1265 = vunpack.c.l.b16 %v1250
    %v1266 = vunpack.c.l.b16 %v1251
    %v1267 = vunpack.c.l.b16 %v1252
    %v1268 = vpack.c.b16 %v1265, %v1264
    %v1269 = vpack.c.b16 %v1267, %v1266
    %v1273 = vsel %vm216, %v1248, 0
    %1275 = vmatprep.subr.bf16.mxu0 0
    %1276 = vmatpush1.bf16.msra.mxu0 0
    %1277 = vmatprep.subr.bf16.mxu0 0
    %1278 = vmatpush1.bf16.msra.mxu0 0
    %1279 = vmatprep.subr.bf16.mxu0 0
    %1280 = vmatpush1.bf16.msra.mxu0 0
    %1281 = vmatprep.subr.bf16.mxu0 0
    %1282 = vmatpush1.bf16.msra.mxu0 0
    %1283 = vmatprep.subr.bf16.mxu0 0
    %1284 = vmatpush1.bf16.msra.mxu0 0
    %1285 = vmatprep.subr.bf16.mxu0 0
    %1286 = vmatpush1.bf16.msra.mxu0 0
    %1287 = vmatprep.subr.bf16.mxu0 0
    %1288 = vmatpush1.bf16.msra.mxu0 %v1269
    %1289 = vmatprep.subr.bf16.mxu0 0
    %1290 = vmatpush1.bf16.msra.mxu0 %v1268
    %1291 = vmatprep.subr.bf16.mxu0 0
    %1292 = vmatpush2.bf16.msra.mxu0 0
    %1293 = vmatprep.subr.bf16.mxu0 0
    %1294 = vmatpush2.bf16.msra.mxu0 0
    %1295 = vmatprep.subr.bf16.mxu0 0
    %1296 = vmatpush2.bf16.msra.mxu0 0
    %1297 = vmatprep.subr.bf16.mxu0 0
    %1298 = vmatpush2.bf16.msra.mxu0 0
    %1299 = vmatprep.subr.bf16.mxu0 0
    %1300 = vmatpush2.bf16.msra.mxu0 0
    %1301 = vmatprep.subr.bf16.mxu0 0
    %1302 = vmatpush2.bf16.msra.mxu0 0
    %1303 = vmatprep.subr.bf16.mxu0 0
    %1304 = vmatpush2.bf16.msra.mxu0 0
    %1305 = vmatprep.subr.bf16.mxu0 0
    %1306 = vmatpush2.bf16.msra.mxu0 0
    %1307 = vmatprep.mubr.bf16.mxu0 0
    %1308 = vmatmul.mubr.bf16.gmra.mxu0 %v1273
    %v1309 = vpop.f32.mrf.mxu0
    %v1310 = vadd.f32 %v1258, %v1309
    %v1311 = vpop.f32.mrf.mxu0
    %v1312 = vpop.f32.mrf.mxu0
    %v1313 = vpop.f32.mrf.mxu0
    %1314 = vdwg.mxu0
    %1315 = vst [vmem:[#allocation7] sm:$0xff] %v1310
    // Predicated region
    $region50: #{decoder_forward_seq.1} parent=1 // pred_check
      _
    $region51: #{decoder_forward_seq.1} parent=1 // pred_check_branch
      %1317 = sbr.rel (0) target = $region53
    $region52: #{decoder_forward_seq.1} parent=1 // pred_region
      %s1319 = ssub.s32 128, 128
      %1320 = vsyncadd [#allocation4], %s1319
      %s1322 = sshll.u32 [#allocation7], 4
      %s1323 = int_to_ptr.vmem [resolvable:$true] %s1322
      %1325 = dma.vmem_to_hbm [thread:$0]  %s1323, 128, %s9, [#allocation4]
    $region53: #{decoder_forward_seq.1} parent=1 // pred_fallthru
      _
    // Predicated region
    $region54: #{decoder_forward_seq.1} parent=1 // pred_check
      _
    $region55: #{decoder_forward_seq.1} parent=1 // pred_check_branch
      %1327 = sbr.rel (0) target = $region57
    $region56: #{decoder_forward_seq.1} parent=1 // pred_region
      _
    $region57: #{decoder_forward_seq.1} parent=1 // pred_fallthru
      _
    // Predicated region
    $region58: #{decoder_forward_seq.1} parent=1 // pred_check
      _
    $region59: #{decoder_forward_seq.1} parent=1 // pred_check_branch
      %1329 = sbr.rel (0) target = $region61
    $region60: #{decoder_forward_seq.1} parent=1 // pred_region
      _
    $region61: #{decoder_forward_seq.1} parent=1 // pred_fallthru
      _
    // Predicated region
    $region62: #{decoder_forward_seq.1} parent=1 // pred_check
      _
    $region63: #{decoder_forward_seq.1} parent=1 // pred_check_branch
      %1331 = sbr.rel (0) target = $region65
    $region64: #{decoder_forward_seq.1} parent=1 // pred_region
      %1332 = dma.done [#allocation4], 128
    $region65: #{decoder_forward_seq.1} parent=1 // pred_fallthru
      _
    // Predicated region
    $region66: #{decoder_forward_seq.1} parent=1 // pred_check
      _
    $region67: #{decoder_forward_seq.1} parent=1 // pred_check_branch
      %1334 = sbr.rel (0) target = $region69
    $region68: #{decoder_forward_seq.1} parent=1 // pred_region
      _
    $region69: #{decoder_forward_seq.1} parent=1 // pred_fallthru
      _
    // Predicated region
    $region70: #{decoder_forward_seq.1} parent=1 // pred_check
      _
    $region71: #{decoder_forward_seq.1} parent=1 // pred_check_branch
      %1336 = sbr.rel (0) target = $region73
    $region72: #{decoder_forward_seq.1} parent=1 // pred_region
      _
    $region73: #{decoder_forward_seq.1} parent=1 // pred_fallthru
      _
    %1337 = vsyncpa [#allocation3], 1
    %1338 = vsyncpa [#allocation6], 1
    %1339 = vsyncpa [#allocation4], 1

</llo_original>
